<compile_context>
chip_gen: v5e
topology: v5e:2x2
jax: 0.10.0
libtpu: 0.0.40
codegen_flags: <defaults>
</compile_context>

<pallas_src>
import functools

import jax
import jax.numpy as jnp
import numpy as np
from jax.experimental import pallas as pl
from jax.experimental.pallas import tpu as pltpu

D_IN = 64   # fc_1 in/out features
D_OUT = 2   # fc_2 out features (gamma, beta)


def _feat_transformer_kernel(x_ref, w1t_ref, b1_ref, wg_ref, bg_ref, wb_ref, bb_ref,
                             out_ref):
    x = x_ref[...]                                                    # (TM, 64) f32

    # fc_1 + ReLU (W1 already transposed on the host: no in-kernel .T)
    h = jnp.dot(x, w1t_ref[...], preferred_element_type=jnp.float32,
                precision=jax.lax.Precision.HIGHEST) + b1_ref[...]
    h = jnp.maximum(h, 0.0)

    # fc_2 with pre-broadcast gamma/beta weight columns: both dots produce (TM, 64)
    # tiles whose 64 lanes all hold the per-row scalar -> FiLM is a plain VPU op.
    gamma = jnp.dot(h, wg_ref[...], preferred_element_type=jnp.float32,
                    precision=jax.lax.Precision.HIGHEST) + bg_ref[...]
    beta = jnp.dot(h, wb_ref[...], preferred_element_type=jnp.float32,
                   precision=jax.lax.Precision.HIGHEST) + bb_ref[...]

    out_ref[...] = x * gamma + beta


@functools.partial(jax.jit, static_argnames=("tile_m",))
def feat_transformer(x, w1, b1, w2, b2, *, tile_m=8192):
    """x: (N, 64); w1: (64, 64); b1: (64,); w2: (2, 64); b2: (2,)."""
    n, d = x.shape
    assert d == D_IN, f"expected {D_IN} features, got {d}"
    assert w1.shape == (D_IN, D_IN) and w2.shape == (D_OUT, D_IN)

    x = x.astype(jnp.float32)

    # One-time host-side parameter prep (keeps transposes / lane slices / lane
    # broadcasts out of the kernel).
    w1t = jnp.asarray(w1, jnp.float32).T                              # (64, 64)
    b1r = jnp.asarray(b1, jnp.float32).reshape(1, D_IN)               # (1, 64)
    w2t = jnp.asarray(w2, jnp.float32).T                              # (64, 2)
    wg = jnp.broadcast_to(w2t[:, 0:1], (D_IN, D_IN))                  # (64, 64) gamma col
    wb = jnp.broadcast_to(w2t[:, 1:2], (D_IN, D_IN))                  # (64, 64) beta col
    b2f = jnp.asarray(b2, jnp.float32)
    bg = jnp.broadcast_to(b2f[0], (1, D_IN))                          # (1, 64)
    bb = jnp.broadcast_to(b2f[1], (1, D_IN))                          # (1, 64)

    # Row tile: as large as possible (bandwidth-bound), but
    #   * <= ceil(N/2) so the grid has >= 2 steps (both v7x TensorCores busy),
    #   * <= tile_m (default 8192 -> ~8 MiB double-buffered in+out, safe for v5e's
    #     16 MiB scoped VMEM and v7x's 32 MiB scoped VMEM),
    #   * a multiple of 8 sublanes.
    half = pl.cdiv(n, 2) if n > 8 else n
    tm = max(8, min(tile_m, half))
    tm = ((tm + 7) // 8) * 8
    grid = (pl.cdiv(n, tm),)   # ragged last block is masked by Pallas (no pad / slice)

    const2 = lambda i: (0, 0)
    in_specs = [
        pl.BlockSpec((tm, D_IN), lambda i: (i, 0)),      # x: streamed per step
        pl.BlockSpec((D_IN, D_IN), const2),              # W1.T            (VMEM-resident)
        pl.BlockSpec((1, D_IN), const2),                 # b1
        pl.BlockSpec((D_IN, D_IN), const2),              # gamma weight column, broadcast
        pl.BlockSpec((1, D_IN), const2),                 # gamma bias, broadcast
        pl.BlockSpec((D_IN, D_IN), const2),              # beta weight column, broadcast
        pl.BlockSpec((1, D_IN), const2),                 # beta bias, broadcast
    ]
    out_spec = pl.BlockSpec((tm, D_IN), lambda i: (i, 0))

    out = pl.pallas_call(
        _feat_transformer_kernel,
        out_shape=jax.ShapeDtypeStruct((n, D_IN), jnp.float32),
        grid=grid,
        in_specs=in_specs,
        out_specs=out_spec,
        compiler_params=pltpu.CompilerParams(
            dimension_semantics=("parallel",)),          # megacore on v7x, harmless elsewhere
    )(x, w1t, b1r, wg, bg, wb, bb)

    return out


def _reference(x, w1, b1, w2, b2):
    """Pure-JAX reference mirroring the PyTorch forward exactly."""
    h = jax.nn.relu(x @ w1.T + b1)
    y = h @ w2.T + b2
    gammas = y[:, 0]
    betas = y[:, 1]
    return x * gammas[:, None] + betas[:, None]


if __name__ == "__main__":
    key = jax.random.PRNGKey(0)
    kx, k1, kb1, k2, kb2 = jax.random.split(key, 5)

    # Small test shape; N deliberately not a multiple of the chosen tile to exercise
    # the ragged (masked) last grid block.
    N = 200
    x = jax.random.normal(kx, (N, D_IN), dtype=jnp.float32)
    w1 = jax.random.normal(k1, (D_IN, D_IN), dtype=jnp.float32) * 0.1
    b1 = jax.random.normal(kb1, (D_IN,), dtype=jnp.float32) * 0.1
    w2 = jax.random.normal(k2, (D_OUT, D_IN), dtype=jnp.float32) * 0.1
    b2 = jax.random.normal(kb2, (D_OUT,), dtype=jnp.float32) * 0.1

    out = feat_transformer(x, w1, b1, w2, b2)
    out = jax.block_until_ready(out)

    ref = _reference(x, w1, b1, w2, b2)
    np.testing.assert_allclose(np.asarray(out), np.asarray(ref), rtol=1e-4, atol=1e-4)

    print("KERNEL_OK")
</pallas_src>

<mosaic_0001>
module attributes {stable_mosaic.version = 11 : i64} {
  func.func @_feat_transformer_kernel(%arg0: i32, %arg1: memref<104x64xf32, #tpu.memory_space<vmem>>, %arg2: memref<64x64xf32, #tpu.memory_space<vmem>>, %arg3: memref<1x64xf32, #tpu.memory_space<vmem>>, %arg4: memref<64x64xf32, #tpu.memory_space<vmem>>, %arg5: memref<1x64xf32, #tpu.memory_space<vmem>>, %arg6: memref<64x64xf32, #tpu.memory_space<vmem>>, %arg7: memref<1x64xf32, #tpu.memory_space<vmem>>, %arg8: memref<104x64xf32, #tpu.memory_space<vmem>>) attributes {dimension_semantics = [#tpu.dimension_semantics<parallel>], iteration_bounds = array<i64: 2>, scalar_prefetch = 0 : i64, scratch_operands = 0 : i64, tpu.core_type = #tpu.core_type<tc>, window_params = [{transform_indices = @transform_0, window_bounds = array<i64: 104, 64>}, {pipeline_mode = #tpu.pipeline_mode<synchronous>, transform_indices = @transform_1, window_bounds = array<i64: 64, 64>}, {pipeline_mode = #tpu.pipeline_mode<synchronous>, transform_indices = @transform_2, window_bounds = array<i64: 1, 64>}, {pipeline_mode = #tpu.pipeline_mode<synchronous>, transform_indices = @transform_3, window_bounds = array<i64: 64, 64>}, {pipeline_mode = #tpu.pipeline_mode<synchronous>, transform_indices = @transform_4, window_bounds = array<i64: 1, 64>}, {pipeline_mode = #tpu.pipeline_mode<synchronous>, transform_indices = @transform_5, window_bounds = array<i64: 64, 64>}, {pipeline_mode = #tpu.pipeline_mode<synchronous>, transform_indices = @transform_6, window_bounds = array<i64: 1, 64>}, {transform_indices = @transform_7, window_bounds = array<i64: 104, 64>}]} {
    %c0 = arith.constant 0 : index
    %c0_0 = arith.constant 0 : index
    %0 = vector.load %arg1[%c0, %c0_0] : memref<104x64xf32, #tpu.memory_space<vmem>>, vector<104x64xf32>
    %c0_1 = arith.constant 0 : index
    %c0_2 = arith.constant 0 : index
    %1 = vector.load %arg2[%c0_1, %c0_2] : memref<64x64xf32, #tpu.memory_space<vmem>>, vector<64x64xf32>
    %cst = arith.constant dense<0.000000e+00> : vector<104x64xf32>
    %2 = tpu.matmul %0, %1, %cst {dimension_numbers = #tpu.dot_dimension_numbers<[1], [0], [0], [1], [0, 0, 1, 1], [], []>, precision = #tpu.contract_precision<fp32>} : vector<104x64xf32>, vector<64x64xf32>, vector<104x64xf32> -> vector<104x64xf32>
    %c0_3 = arith.constant 0 : index
    %c0_4 = arith.constant 0 : index
    %3 = vector.load %arg3[%c0_3, %c0_4] : memref<1x64xf32, #tpu.memory_space<vmem>>, vector<1x64xf32>
    %4 = vector.broadcast %3 : vector<1x64xf32> to vector<104x64xf32>
    %5 = arith.addf %2, %4 : vector<104x64xf32>
    %cst_5 = arith.constant 0.000000e+00 : f32
    %6 = vector.broadcast %cst_5 : f32 to vector<104x64xf32>
    %7 = arith.maximumf %5, %6 : vector<104x64xf32>
    %c0_6 = arith.constant 0 : index
    %c0_7 = arith.constant 0 : index
    %8 = vector.load %arg4[%c0_6, %c0_7] : memref<64x64xf32, #tpu.memory_space<vmem>>, vector<64x64xf32>
    %cst_8 = arith.constant dense<0.000000e+00> : vector<104x64xf32>
    %9 = tpu.matmul %7, %8, %cst_8 {dimension_numbers = #tpu.dot_dimension_numbers<[1], [0], [0], [1], [0, 0, 1, 1], [], []>, precision = #tpu.contract_precision<fp32>} : vector<104x64xf32>, vector<64x64xf32>, vector<104x64xf32> -> vector<104x64xf32>
    %c0_9 = arith.constant 0 : index
    %c0_10 = arith.constant 0 : index
    %10 = vector.load %arg5[%c0_9, %c0_10] : memref<1x64xf32, #tpu.memory_space<vmem>>, vector<1x64xf32>
    %11 = vector.broadcast %10 : vector<1x64xf32> to vector<104x64xf32>
    %12 = arith.addf %9, %11 : vector<104x64xf32>
    %c0_11 = arith.constant 0 : index
    %c0_12 = arith.constant 0 : index
    %13 = vector.load %arg6[%c0_11, %c0_12] : memref<64x64xf32, #tpu.memory_space<vmem>>, vector<64x64xf32>
    %cst_13 = arith.constant dense<0.000000e+00> : vector<104x64xf32>
    %14 = tpu.matmul %7, %13, %cst_13 {dimension_numbers = #tpu.dot_dimension_numbers<[1], [0], [0], [1], [0, 0, 1, 1], [], []>, precision = #tpu.contract_precision<fp32>} : vector<104x64xf32>, vector<64x64xf32>, vector<104x64xf32> -> vector<104x64xf32>
    %c0_14 = arith.constant 0 : index
    %c0_15 = arith.constant 0 : index
    %15 = vector.load %arg7[%c0_14, %c0_15] : memref<1x64xf32, #tpu.memory_space<vmem>>, vector<1x64xf32>
    %16 = vector.broadcast %15 : vector<1x64xf32> to vector<104x64xf32>
    %17 = arith.addf %14, %16 : vector<104x64xf32>
    %18 = arith.mulf %0, %12 : vector<104x64xf32>
    %19 = arith.addf %18, %17 : vector<104x64xf32>
    %c0_16 = arith.constant 0 : index
    %c0_17 = arith.constant 0 : index
    %20 = vector.load %arg8[%c0_16, %c0_17] : memref<104x64xf32, #tpu.memory_space<vmem>>, vector<104x64xf32>
    tpu.vector_store %arg8[%c0_16, %c0_17], %19 {strides = array<i32>} : memref<104x64xf32, #tpu.memory_space<vmem>>, vector<104x64xf32>,
    return
  }
  func.func @transform_0(%arg0: i32) -> (i32, i32) {
    %c0_i32 = arith.constant 0 : i32
    %c0_i32_0 = arith.constant 0 : i32
    return %arg0, %c0_i32 : i32, i32
  }
  func.func @transform_1(%arg0: i32) -> (i32, i32) {
    %c0_i32 = arith.constant 0 : i32
    %c0_i32_0 = arith.constant 0 : i32
    %c0_i32_1 = arith.constant 0 : i32
    return %c0_i32, %c0_i32_0 : i32, i32
  }
  func.func @transform_2(%arg0: i32) -> (i32, i32) {
    %c0_i32 = arith.constant 0 : i32
    %c0_i32_0 = arith.constant 0 : i32
    %c0_i32_1 = arith.constant 0 : i32
    return %c0_i32, %c0_i32_0 : i32, i32
  }
  func.func @transform_3(%arg0: i32) -> (i32, i32) {
    %c0_i32 = arith.constant 0 : i32
    %c0_i32_0 = arith.constant 0 : i32
    %c0_i32_1 = arith.constant 0 : i32
    return %c0_i32, %c0_i32_0 : i32, i32
  }
  func.func @transform_4(%arg0: i32) -> (i32, i32) {
    %c0_i32 = arith.constant 0 : i32
    %c0_i32_0 = arith.constant 0 : i32
    %c0_i32_1 = arith.constant 0 : i32
    return %c0_i32, %c0_i32_0 : i32, i32
  }
  func.func @transform_5(%arg0: i32) -> (i32, i32) {
    %c0_i32 = arith.constant 0 : i32
    %c0_i32_0 = arith.constant 0 : i32
    %c0_i32_1 = arith.constant 0 : i32
    return %c0_i32, %c0_i32_0 : i32, i32
  }
  func.func @transform_6(%arg0: i32) -> (i32, i32) {
    %c0_i32 = arith.constant 0 : i32
    %c0_i32_0 = arith.constant 0 : i32
    %c0_i32_1 = arith.constant 0 : i32
    return %c0_i32, %c0_i32_0 : i32, i32
  }
  func.func @transform_7(%arg0: i32) -> (i32, i32) {
    %c0_i32 = arith.constant 0 : i32
    %c0_i32_0 = arith.constant 0 : i32
    return %arg0, %c0_i32 : i32, i32
  }
}

</mosaic_0001>

<llo_original>
// kernel: feat_transformer.1
$region0: #{feat_transformer.1}
  #allocation0 [shape = 'u32[]', space=smem, size = 0x4, offset = 0x4, fixed_abs, tag = 'smem constant byte address 0x4 - core index']
  #allocation1 [shape = 'u32[72,128]{1,0:T(1,128)}', space=vmem, size = 0x9000, scoped, tag = 'internal scratch']
  %s0 = inlined_call_operand.vmem [shape: f32[200,64], index: 0, kind: input, shape index: {}]
  %s1 = inlined_call_operand.vmem [shape: f32[64,64], index: 1, kind: input, shape index: {}]
  %s2 = inlined_call_operand.vmem [shape: f32[1,64], index: 2, kind: input, shape index: {}]
  %s3 = inlined_call_operand.vmem [shape: f32[64,64], index: 3, kind: input, shape index: {}]
  %s4 = inlined_call_operand.vmem [shape: f32[1,64], index: 4, kind: input, shape index: {}]
  %s5 = inlined_call_operand.vmem [shape: f32[64,64], index: 5, kind: input, shape index: {}]
  %s6 = inlined_call_operand.vmem [shape: f32[1,64], index: 6, kind: input, shape index: {}]
  %s7 = inlined_call_operand.vmem [shape: f32[200,64], index: 7, kind: output, shape index: {}]
  %s8 = sld [smem:[#allocation0]]
  $region109: #{feat_transformer.1} parent=0
    _
  %s10 = ssub.s32 1, %s8
  %s11 = scalar_select 0, %s10, %s8
  $region1: #{feat_transformer.1} parent=0
    #allocation2 [shape = 'u8[106496]{0}', space=vmem, size = 0x1a000, scoped, tag = 'output window, operand 0']
    loop: start=0, step=1, limit=4
    $region2: #{feat_transformer.1} parent=1 // loop_pre_header
      _
    $region3: #{feat_transformer.1} parent=1 // loop_header
      %s13 = sphi 0, %s17
      %p14 = scmp.ge.s32.totalorder %s13, 4
      %s23 = sphi 0, %s25
      %s26 = sphi 0, %s23
      %s27 = sphi 0, %s26
      %s43 = sphi 0, %s27
      %s47 = sphi 0, %s47
      %s49 = sphi 0, %s47
      %s50 = sphi 0, %s49
      %s64 = sphi 0, %s50
      %s68 = sphi 0, %s68
      %s70 = sphi 0, %s68
      %s71 = sphi 0, %s70
      %s85 = sphi 0, %s71
      %s89 = sphi 0, %s89
      %s91 = sphi 0, %s89
      %s92 = sphi 0, %s91
      %s106 = sphi 0, %s92
      %s110 = sphi 0, %s110
      %s112 = sphi 0, %s110
      %s113 = sphi 0, %s112
      %s127 = sphi 0, %s113
      %s131 = sphi 0, %s131
      %s133 = sphi 0, %s131
      %s134 = sphi 0, %s133
      %s148 = sphi 0, %s134
      %s152 = sphi 0, %s152
      %s154 = sphi 0, %s152
      %s155 = sphi 0, %s154
      %s169 = sphi 0, %s155
      %s175 = sphi 0, %s177
      %s178 = sphi 0, %s175
      %s179 = sphi 0, %s178
      %s195 = sphi 0, %s179
    $region4: #{feat_transformer.1} parent=1 // loop_header_branch
      %16 = sbr.rel (%p14) target = $region8
    $region5: #{feat_transformer.1} parent=1 // loop_body
      %s18 = ssub.s32 %s13, 1
      %s19 = ssub.s32 %s13, 2
      %s20 = sadd.s32 %s13, 1
      %s21 = ssub.s32 %s13, %s20
      %p22 = scmp.eq.s32.totalorder %s21, 0
      %s24 = sadd.s32 %s23, 1
      %s25 = scalar_select %p22, %s23, %s24
      %p28 = pneg %p22
      %p29 = scmp.eq.s32.totalorder %s13, 1
      %p30 = por %p28, %p29
      %p31 = scmp.ne.s32.totalorder %s23, %s26
      %p32 = scmp.eq.s32.totalorder %s13, 0
      %p33 = por %p31, %p32
      %p34 = scmp.ne.s32.totalorder %s23, %s26
      %p35 = scmp.eq.s32.totalorder %s18, 1
      %p36 = por %p34, %p35
      %p37 = scmp.ne.s32.totalorder %s26, %s27
      %p38 = scmp.eq.s32.totalorder %s18, 0
      %p39 = por %p37, %p38
      %p40 = scmp.ne.s32.totalorder %s26, %s27
      %p41 = scmp.eq.s32.totalorder %s19, 1
      %p42 = por %p40, %p41
      %p44 = scmp.ne.s32.totalorder %s27, %s43
      %p45 = scmp.eq.s32.totalorder %s19, 0
      %p46 = por %p44, %p45
      %s48 = sadd.s32 %s47, 1
      %p51 = scmp.eq.s32.totalorder %s13, 1
      %p52 = scmp.ne.s32.totalorder %s47, %s49
      %p53 = scmp.eq.s32.totalorder %s13, 0
      %p54 = por %p52, %p53
      %p55 = scmp.ne.s32.totalorder %s47, %s49
      %p56 = scmp.eq.s32.totalorder %s18, 1
      %p57 = por %p55, %p56
      %p58 = scmp.ne.s32.totalorder %s49, %s50
      %p59 = scmp.eq.s32.totalorder %s18, 0
      %p60 = por %p58, %p59
      %p61 = scmp.ne.s32.totalorder %s49, %s50
      %p62 = scmp.eq.s32.totalorder %s19, 1
      %p63 = por %p61, %p62
      %p65 = scmp.ne.s32.totalorder %s50, %s64
      %p66 = scmp.eq.s32.totalorder %s19, 0
      %p67 = por %p65, %p66
      %s69 = sadd.s32 %s68, 1
      %p72 = scmp.eq.s32.totalorder %s13, 1
      %p73 = scmp.ne.s32.totalorder %s68, %s70
      %p74 = scmp.eq.s32.totalorder %s13, 0
      %p75 = por %p73, %p74
      %p76 = scmp.ne.s32.totalorder %s68, %s70
      %p77 = scmp.eq.s32.totalorder %s18, 1
      %p78 = por %p76, %p77
      %p79 = scmp.ne.s32.totalorder %s70, %s71
      %p80 = scmp.eq.s32.totalorder %s18, 0
      %p81 = por %p79, %p80
      %p82 = scmp.ne.s32.totalorder %s70, %s71
      %p83 = scmp.eq.s32.totalorder %s19, 1
      %p84 = por %p82, %p83
      %p86 = scmp.ne.s32.totalorder %s71, %s85
      %p87 = scmp.eq.s32.totalorder %s19, 0
      %p88 = por %p86, %p87
      %s90 = sadd.s32 %s89, 1
      %p93 = scmp.eq.s32.totalorder %s13, 1
      %p94 = scmp.ne.s32.totalorder %s89, %s91
      %p95 = scmp.eq.s32.totalorder %s13, 0
      %p96 = por %p94, %p95
      %p97 = scmp.ne.s32.totalorder %s89, %s91
      %p98 = scmp.eq.s32.totalorder %s18, 1
      %p99 = por %p97, %p98
      %p100 = scmp.ne.s32.totalorder %s91, %s92
      %p101 = scmp.eq.s32.totalorder %s18, 0
      %p102 = por %p100, %p101
      %p103 = scmp.ne.s32.totalorder %s91, %s92
      %p104 = scmp.eq.s32.totalorder %s19, 1
      %p105 = por %p103, %p104
      %p107 = scmp.ne.s32.totalorder %s92, %s106
      %p108 = scmp.eq.s32.totalorder %s19, 0
      %p109 = por %p107, %p108
      %s111 = sadd.s32 %s110, 1
      %p114 = scmp.eq.s32.totalorder %s13, 1
      %p115 = scmp.ne.s32.totalorder %s110, %s112
      %p116 = scmp.eq.s32.totalorder %s13, 0
      %p117 = por %p115, %p116
      %p118 = scmp.ne.s32.totalorder %s110, %s112
      %p119 = scmp.eq.s32.totalorder %s18, 1
      %p120 = por %p118, %p119
      %p121 = scmp.ne.s32.totalorder %s112, %s113
      %p122 = scmp.eq.s32.totalorder %s18, 0
      %p123 = por %p121, %p122
      %p124 = scmp.ne.s32.totalorder %s112, %s113
      %p125 = scmp.eq.s32.totalorder %s19, 1
      %p126 = por %p124, %p125
      %p128 = scmp.ne.s32.totalorder %s113, %s127
      %p129 = scmp.eq.s32.totalorder %s19, 0
      %p130 = por %p128, %p129
      %s132 = sadd.s32 %s131, 1
      %p135 = scmp.eq.s32.totalorder %s13, 1
      %p136 = scmp.ne.s32.totalorder %s131, %s133
      %p137 = scmp.eq.s32.totalorder %s13, 0
      %p138 = por %p136, %p137
      %p139 = scmp.ne.s32.totalorder %s131, %s133
      %p140 = scmp.eq.s32.totalorder %s18, 1
      %p141 = por %p139, %p140
      %p142 = scmp.ne.s32.totalorder %s133, %s134
      %p143 = scmp.eq.s32.totalorder %s18, 0
      %p144 = por %p142, %p143
      %p145 = scmp.ne.s32.totalorder %s133, %s134
      %p146 = scmp.eq.s32.totalorder %s19, 1
      %p147 = por %p145, %p146
      %p149 = scmp.ne.s32.totalorder %s134, %s148
      %p150 = scmp.eq.s32.totalorder %s19, 0
      %p151 = por %p149, %p150
      %s153 = sadd.s32 %s152, 1
      %p156 = scmp.eq.s32.totalorder %s13, 1
      %p157 = scmp.ne.s32.totalorder %s152, %s154
      %p158 = scmp.eq.s32.totalorder %s13, 0
      %p159 = por %p157, %p158
      %p160 = scmp.ne.s32.totalorder %s152, %s154
      %p161 = scmp.eq.s32.totalorder %s18, 1
      %p162 = por %p160, %p161
      %p163 = scmp.ne.s32.totalorder %s154, %s155
      %p164 = scmp.eq.s32.totalorder %s18, 0
      %p165 = por %p163, %p164
      %p166 = scmp.ne.s32.totalorder %s154, %s155
      %p167 = scmp.eq.s32.totalorder %s19, 1
      %p168 = por %p166, %p167
      %p170 = scmp.ne.s32.totalorder %s155, %s169
      %p171 = scmp.eq.s32.totalorder %s19, 0
      %p172 = por %p170, %p171
      %s173 = ssub.s32 %s13, %s20
      %p174 = scmp.eq.s32.totalorder %s173, 0
      %s176 = sadd.s32 %s175, 1
      %s177 = scalar_select %p174, %s175, %s176
      %p180 = pneg %p174
      %p181 = scmp.eq.s32.totalorder %s13, 1
      %p182 = por %p180, %p181
      %p183 = scmp.ne.s32.totalorder %s175, %s178
      %p184 = scmp.eq.s32.totalorder %s13, 0
      %p185 = por %p183, %p184
      %p186 = scmp.ne.s32.totalorder %s175, %s178
      %p187 = scmp.eq.s32.totalorder %s18, 1
      %p188 = por %p186, %p187
      %p189 = scmp.ne.s32.totalorder %s178, %s179
      %p190 = scmp.eq.s32.totalorder %s18, 0
      %p191 = por %p189, %p190
      %p192 = scmp.ne.s32.totalorder %s178, %s179
      %p193 = scmp.eq.s32.totalorder %s19, 1
      %p194 = por %p192, %p193
      %p196 = scmp.ne.s32.totalorder %s179, %s195
      %p197 = scmp.eq.s32.totalorder %s19, 0
      %p198 = por %p196, %p197
      %p199 = scmp.le.s32.totalorder 1, %s13
      %p200 = scmp.lt.s32.totalorder %s13, 3
      %p201 = pnand %p199, %p200
      %p202 = pneg %p201
      // Predicated region
      $region9: #{feat_transformer.1} parent=5 // pred_check
        _
      $region10: #{feat_transformer.1} parent=5 // pred_check_branch
        %204 = sbr.rel (%p201) target = $region12
      $region11: #{feat_transformer.1} parent=5 // pred_region
        %s205 = ssub.s32 %s13, 1
        // Predicated region
        $region13: #{feat_transformer.1} parent=11 // pred_check
          %p206 = pneg %p60
        $region14: #{feat_transformer.1} parent=11 // pred_check_branch
          %208 = sbr.rel (%p206) target = $region16
        $region15: #{feat_transformer.1} parent=11 // pred_region
          _
        $region16: #{feat_transformer.1} parent=11 // pred_fallthru
          _
        // Predicated region
        $region17: #{feat_transformer.1} parent=11 // pred_check
          %p209 = pneg %p81
        $region18: #{feat_transformer.1} parent=11 // pred_check_branch
          %211 = sbr.rel (%p209) target = $region20
        $region19: #{feat_transformer.1} parent=11 // pred_region
          _
        $region20: #{feat_transformer.1} parent=11 // pred_fallthru
          _
        // Predicated region
        $region21: #{feat_transformer.1} parent=11 // pred_check
          %p212 = pneg %p102
        $region22: #{feat_transformer.1} parent=11 // pred_check_branch
          %214 = sbr.rel (%p212) target = $region24
        $region23: #{feat_transformer.1} parent=11 // pred_region
          _
        $region24: #{feat_transformer.1} parent=11 // pred_fallthru
          _
        // Predicated region
        $region25: #{feat_transformer.1} parent=11 // pred_check
          %p215 = pneg %p123
        $region26: #{feat_transformer.1} parent=11 // pred_check_branch
          %217 = sbr.rel (%p215) target = $region28
        $region27: #{feat_transformer.1} parent=11 // pred_region
          _
        $region28: #{feat_transformer.1} parent=11 // pred_fallthru
          _
        // Predicated region
        $region29: #{feat_transformer.1} parent=11 // pred_check
          %p218 = pneg %p144
        $region30: #{feat_transformer.1} parent=11 // pred_check_branch
          %220 = sbr.rel (%p218) target = $region32
        $region31: #{feat_transformer.1} parent=11 // pred_region
          _
        $region32: #{feat_transformer.1} parent=11 // pred_fallthru
          _
        // Predicated region
        $region33: #{feat_transformer.1} parent=11 // pred_check
          %p221 = pneg %p165
        $region34: #{feat_transformer.1} parent=11 // pred_check_branch
          %223 = sbr.rel (%p221) target = $region36
        $region35: #{feat_transformer.1} parent=11 // pred_region
          _
        $region36: #{feat_transformer.1} parent=11 // pred_fallthru
          _
      $region12: #{feat_transformer.1} parent=5 // pred_fallthru
        _
      %p224 = scmp.lt.s32.totalorder %s13, 2
      // Predicated region
      $region37: #{feat_transformer.1} parent=5 // pred_check
        %p225 = pneg %p224
      $region38: #{feat_transformer.1} parent=5 // pred_check_branch
        %227 = sbr.rel (%p225) target = $region40
      $region39: #{feat_transformer.1} parent=5 // pred_region
        // Predicated region
        $region41: #{feat_transformer.1} parent=39 // pred_check
          %p228 = pneg %p33
        $region42: #{feat_transformer.1} parent=39 // pred_check_branch
          %230 = sbr.rel (%p228) target = $region44
        $region43: #{feat_transformer.1} parent=39 // pred_region
          %s231 = smul.u32 13, %s13
          %s232 = ssub.s32 25, %s231
          %p233 = scmp.lt.s32.totalorder %s232, 13
          %s234 = scalar_select %p233, %s232, 13
          %s235 = smul.u32 8, %s234
          %p236 = scmp.lt.s32.totalorder %s231, 24
          %s237 = scalar_select %p236, %s231, 24
          %s238 = smul.addr %s237, 8
          %s239 = scalar_lea.vmem %s0, %s238
          %s240 = smul.u32 13, %s13
          %s241 = ssub.s32 25, %s240
          %p242 = scmp.lt.s32.totalorder %s241, 13
          %s243 = scalar_select %p242, %s241, 13
          %s244 = smul.u32 8, %s243
        $region44: #{feat_transformer.1} parent=39 // pred_fallthru
          _
      $region40: #{feat_transformer.1} parent=5 // pred_fallthru
        _
      %p245 = scmp.le.s32.totalorder 1, %s13
      %p246 = scmp.lt.s32.totalorder %s13, 3
      %p247 = pnand %p245, %p246
      %p248 = pneg %p247
      // Predicated region
      $region45: #{feat_transformer.1} parent=5 // pred_check
        _
      $region46: #{feat_transformer.1} parent=5 // pred_check_branch
        %250 = sbr.rel (%p247) target = $region48
      $region47: #{feat_transformer.1} parent=5 // pred_region
        %s251 = ssub.s32 %s13, 1
        %s252 = smul.u32 13, %s18
        %s253 = ssub.s32 25, %s252
        %p254 = scmp.lt.s32.totalorder %s253, 13
        %s255 = scalar_select %p254, %s253, 13
        %s256 = smul.u32 8, %s255
        %p257 = scmp.lt.s32.totalorder %s252, 24
        %s258 = scalar_select %p257, %s252, 24
        %s259 = smul.addr %s258, 8
        %s260 = scalar_lea.vmem %s0, %s259
        %p261 = pneg %p39
        %p262 = pneg %p36
        %p263 = pneg %p60
        %p264 = pneg %p57
        %p265 = pneg %p81
        %p266 = pneg %p78
        %p267 = pneg %p102
        %p268 = pneg %p99
        %p269 = pneg %p123
        %p270 = pneg %p120
        %p271 = pneg %p144
        %p272 = pneg %p141
        %p273 = pneg %p165
        %p274 = pneg %p162
        %p275 = pneg %p191
        %p276 = pneg %p188
        %s277 = sand.u32 %s178, 1
        %s278 = sand.u32 %s178, 1
        %s279 = smul.addr %s278, 104
        %s280 = scalar_lea.vmem [#allocation2], %s279
        %s281 = smul.u32 13, %s18
        %s282 = ssub.s32 25, %s281
        %p283 = scmp.lt.s32.totalorder %s282, 13
        %s284 = scalar_select %p283, %s282, 13
        %s285 = smul.u32 8, %s284
        %p286 = scmp.lt.s32.totalorder %s281, 24
        %s287 = scalar_select %p286, %s281, 24
        %s288 = smul.addr %s287, 8
        %s289 = scalar_lea.vmem %s0, %s288
        %s290 = smul.u32 13, %s18
        %s291 = ssub.s32 25, %s290
        %p292 = scmp.lt.s32.totalorder %s291, 13
        %s293 = scalar_select %p292, %s291, 13
        %s294 = smul.u32 8, %s293
        %s295 = smul.u32 13, %s18
        %s296 = ssub.s32 25, %s295
        %p297 = scmp.lt.s32.totalorder %s296, 13
        %s298 = scalar_select %p297, %s296, 13
        %s299 = smul.u32 8, %s298
        %v300 = vld [vmem:[%s289] sm:$0xff]
        %v301 = vld [vmem:[%s289 + $0x8] sm:$0xff]
        %v302 = vld [vmem:[%s289 + $0x10] sm:$0xff]
        %v303 = vld [vmem:[%s289 + $0x18] sm:$0xff]
        %v304 = vld [vmem:[%s289 + $0x20] sm:$0xff]
        %v305 = vld [vmem:[%s289 + $0x28] sm:$0xff]
        %v306 = vld [vmem:[%s289 + $0x30] sm:$0xff]
        %v307 = vld [vmem:[%s289 + $0x38] sm:$0xff]
        %v308 = vld [vmem:[%s289 + $0x40] sm:$0xff]
        %v309 = vld [vmem:[%s289 + $0x48] sm:$0xff]
        %v310 = vld [vmem:[%s289 + $0x50] sm:$0xff]
        %v311 = vld [vmem:[%s289 + $0x58] sm:$0xff]
        %v312 = vld [vmem:[%s289 + $0x60] sm:$0xff]
        %v313 = vld [vmem:[%s1] sm:$0xff]
        %v314 = vld [vmem:[%s1 + $0x8] sm:$0xff]
        %v315 = vld [vmem:[%s1 + $0x10] sm:$0xff]
        %v316 = vld [vmem:[%s1 + $0x18] sm:$0xff]
        %v317 = vld [vmem:[%s1 + $0x20] sm:$0xff]
        %v318 = vld [vmem:[%s1 + $0x28] sm:$0xff]
        %v319 = vld [vmem:[%s1 + $0x30] sm:$0xff]
        %v320 = vld [vmem:[%s1 + $0x38] sm:$0xff]
        %v321 = vld [vmem:[%s2] sm:$0x1]
        %v323 = vperm.slane %v321, 0
        %vm325 = vcmask 523264
        %v327 = vsel %vm325, %v300, 0
        %v330 = vsel %vm325, %v301, 0
        %v333 = vsel %vm325, %v302, 0
        %v336 = vsel %vm325, %v303, 0
        %v339 = vsel %vm325, %v304, 0
        %v342 = vsel %vm325, %v305, 0
        %v345 = vsel %vm325, %v306, 0
        %v348 = vsel %vm325, %v307, 0
        %v351 = vsel %vm325, %v308, 0
        %v354 = vsel %vm325, %v309, 0
        %v357 = vsel %vm325, %v310, 0
        %v360 = vsel %vm325, %v311, 0
        %v363 = vsel %vm325, %v312, 0
        %365 = vmatpush.msra.mxu0 0.0
        %366 = vmatpush.msra.mxu0 0.0
        %367 = vmatpush.msra.mxu0 0.0
        %368 = vmatpush.msra.mxu0 0.0
        %369 = vmatpush.msra.mxu0 0.0
        %370 = vmatpush.msra.mxu0 0.0
        %371 = vmatpush.msra.mxu0 0.0
        %372 = vmatpush.msra.mxu0 0.0
        %v373 = vand.u32 %v320, 4294901760
        %374 = vmatpush.msra.mxu0 %v373
        %v375 = vand.u32 %v319, 4294901760
        %376 = vmatpush.msra.mxu0 %v375
        %v377 = vand.u32 %v318, 4294901760
        %378 = vmatpush.msra.mxu0 %v377
        %v379 = vand.u32 %v317, 4294901760
        %380 = vmatpush.msra.mxu0 %v379
        %v381 = vand.u32 %v316, 4294901760
        %382 = vmatpush.msra.mxu0 %v381
        %v383 = vand.u32 %v315, 4294901760
        %384 = vmatpush.msra.mxu0 %v383
        %v385 = vand.u32 %v314, 4294901760
        %386 = vmatpush.msra.mxu0 %v385
        %v387 = vand.u32 %v313, 4294901760
        %388 = vmatpush.msra.mxu0 %v387
        %v389 = vand.u32 %v327, 4294901760
        %v390 = vsub.f32 %v327, %v389
        %v391 = vand.u32 %v390, 4294901760
        %v392 = vsub.f32 %v390, %v391
        %v393 = vand.u32 %v392, 4294901760
        %394 = vmatmul.f32.gmra.mxu0 %v393
        %v395 = vpop.f32.mrf.mxu0
        %v396 = vadd.f32 %v323, %v395
        %v397 = vand.u32 %v330, 4294901760
        %v398 = vsub.f32 %v330, %v397
        %v399 = vand.u32 %v398, 4294901760
        %v400 = vsub.f32 %v398, %v399
        %v401 = vand.u32 %v400, 4294901760
        %402 = vmatmul.f32.gmra.mxu0 %v401
        %v403 = vpop.f32.mrf.mxu0
        %v404 = vadd.f32 %v323, %v403
        %v405 = vand.u32 %v333, 4294901760
        %v406 = vsub.f32 %v333, %v405
        %v407 = vand.u32 %v406, 4294901760
        %v408 = vsub.f32 %v406, %v407
        %v409 = vand.u32 %v408, 4294901760
        %410 = vmatmul.f32.gmra.mxu0 %v409
        %v411 = vpop.f32.mrf.mxu0
        %v412 = vadd.f32 %v323, %v411
        %v413 = vand.u32 %v336, 4294901760
        %v414 = vsub.f32 %v336, %v413
        %v415 = vand.u32 %v414, 4294901760
        %v416 = vsub.f32 %v414, %v415
        %v417 = vand.u32 %v416, 4294901760
        %418 = vmatmul.f32.gmra.mxu0 %v417
        %v419 = vpop.f32.mrf.mxu0
        %v420 = vadd.f32 %v323, %v419
        %v421 = vand.u32 %v339, 4294901760
        %v422 = vsub.f32 %v339, %v421
        %v423 = vand.u32 %v422, 4294901760
        %v424 = vsub.f32 %v422, %v423
        %v425 = vand.u32 %v424, 4294901760
        %426 = vmatmul.f32.gmra.mxu0 %v425
        %v427 = vpop.f32.mrf.mxu0
        %v428 = vadd.f32 %v323, %v427
        %v429 = vand.u32 %v342, 4294901760
        %v430 = vsub.f32 %v342, %v429
        %v431 = vand.u32 %v430, 4294901760
        %v432 = vsub.f32 %v430, %v431
        %v433 = vand.u32 %v432, 4294901760
        %434 = vmatmul.f32.gmra.mxu0 %v433
        %v435 = vpop.f32.mrf.mxu0
        %v436 = vadd.f32 %v323, %v435
        %v437 = vand.u32 %v345, 4294901760
        %v438 = vsub.f32 %v345, %v437
        %v439 = vand.u32 %v438, 4294901760
        %v440 = vsub.f32 %v438, %v439
        %v441 = vand.u32 %v440, 4294901760
        %442 = vmatmul.f32.gmra.mxu0 %v441
        %v443 = vpop.f32.mrf.mxu0
        %v444 = vadd.f32 %v323, %v443
        %v445 = vand.u32 %v348, 4294901760
        %v446 = vsub.f32 %v348, %v445
        %v447 = vand.u32 %v446, 4294901760
        %v448 = vsub.f32 %v446, %v447
        %v449 = vand.u32 %v448, 4294901760
        %450 = vmatmul.f32.gmra.mxu0 %v449
        %v451 = vpop.f32.mrf.mxu0
        %v452 = vadd.f32 %v323, %v451
        %v453 = vand.u32 %v351, 4294901760
        %v454 = vsub.f32 %v351, %v453
        %v455 = vand.u32 %v454, 4294901760
        %v456 = vsub.f32 %v454, %v455
        %v457 = vand.u32 %v456, 4294901760
        %458 = vmatmul.f32.gmra.mxu0 %v457
        %v459 = vpop.f32.mrf.mxu0
        %v460 = vadd.f32 %v323, %v459
        %v461 = vand.u32 %v354, 4294901760
        %v462 = vsub.f32 %v354, %v461
        %v463 = vand.u32 %v462, 4294901760
        %v464 = vsub.f32 %v462, %v463
        %v465 = vand.u32 %v464, 4294901760
        %466 = vmatmul.f32.gmra.mxu0 %v465
        %v467 = vpop.f32.mrf.mxu0
        %v468 = vadd.f32 %v323, %v467
        %v469 = vand.u32 %v357, 4294901760
        %v470 = vsub.f32 %v357, %v469
        %v471 = vand.u32 %v470, 4294901760
        %v472 = vsub.f32 %v470, %v471
        %v473 = vand.u32 %v472, 4294901760
        %474 = vmatmul.f32.gmra.mxu0 %v473
        %v475 = vpop.f32.mrf.mxu0
        %v476 = vadd.f32 %v323, %v475
        %v477 = vand.u32 %v360, 4294901760
        %v478 = vsub.f32 %v360, %v477
        %v479 = vand.u32 %v478, 4294901760
        %v480 = vsub.f32 %v478, %v479
        %v481 = vand.u32 %v480, 4294901760
        %482 = vmatmul.f32.gmra.mxu0 %v481
        %v483 = vpop.f32.mrf.mxu0
        %v484 = vadd.f32 %v323, %v483
        %v485 = vand.u32 %v363, 4294901760
        %v486 = vsub.f32 %v363, %v485
        %v487 = vand.u32 %v486, 4294901760
        %v488 = vsub.f32 %v486, %v487
        %v489 = vand.u32 %v488, 4294901760
        %490 = vmatmul.f32.gmra.mxu0 %v489
        %v491 = vpop.f32.mrf.mxu0
        %v492 = vadd.f32 %v323, %v491
        %493 = vdwg.mxu0
        %494 = vmatpush.msra.mxu0 0.0
        %495 = vmatpush.msra.mxu0 0.0
        %496 = vmatpush.msra.mxu0 0.0
        %497 = vmatpush.msra.mxu0 0.0
        %498 = vmatpush.msra.mxu0 0.0
        %499 = vmatpush.msra.mxu0 0.0
        %500 = vmatpush.msra.mxu0 0.0
        %501 = vmatpush.msra.mxu0 0.0
        %v502 = vand.u32 %v320, 4294901760
        %v503 = vsub.f32 %v320, %v502
        %v504 = vand.u32 %v503, 4294901760
        %v505 = vsub.f32 %v503, %v504
        %v506 = vand.u32 %v505, 4294901760
        %507 = vmatpush.msra.mxu0 %v506
        %v508 = vand.u32 %v319, 4294901760
        %v509 = vsub.f32 %v319, %v508
        %v510 = vand.u32 %v509, 4294901760
        %v511 = vsub.f32 %v509, %v510
        %v512 = vand.u32 %v511, 4294901760
        %513 = vmatpush.msra.mxu0 %v512
        %v514 = vand.u32 %v318, 4294901760
        %v515 = vsub.f32 %v318, %v514
        %v516 = vand.u32 %v515, 4294901760
        %v517 = vsub.f32 %v515, %v516
        %v518 = vand.u32 %v517, 4294901760
        %519 = vmatpush.msra.mxu0 %v518
        %v520 = vand.u32 %v317, 4294901760
        %v521 = vsub.f32 %v317, %v520
        %v522 = vand.u32 %v521, 4294901760
        %v523 = vsub.f32 %v521, %v522
        %v524 = vand.u32 %v523, 4294901760
        %525 = vmatpush.msra.mxu0 %v524
        %v526 = vand.u32 %v316, 4294901760
        %v527 = vsub.f32 %v316, %v526
        %v528 = vand.u32 %v527, 4294901760
        %v529 = vsub.f32 %v527, %v528
        %v530 = vand.u32 %v529, 4294901760
        %531 = vmatpush.msra.mxu0 %v530
        %v532 = vand.u32 %v315, 4294901760
        %v533 = vsub.f32 %v315, %v532
        %v534 = vand.u32 %v533, 4294901760
        %v535 = vsub.f32 %v533, %v534
        %v536 = vand.u32 %v535, 4294901760
        %537 = vmatpush.msra.mxu0 %v536
        %v538 = vand.u32 %v314, 4294901760
        %v539 = vsub.f32 %v314, %v538
        %v540 = vand.u32 %v539, 4294901760
        %v541 = vsub.f32 %v539, %v540
        %v542 = vand.u32 %v541, 4294901760
        %543 = vmatpush.msra.mxu0 %v542
        %v544 = vand.u32 %v313, 4294901760
        %v545 = vsub.f32 %v313, %v544
        %v546 = vand.u32 %v545, 4294901760
        %v547 = vsub.f32 %v545, %v546
        %v548 = vand.u32 %v547, 4294901760
        %549 = vmatpush.msra.mxu0 %v548
        %v550 = vand.u32 %v327, 4294901760
        %551 = vmatmul.f32.gmra.mxu0 %v550
        %v552 = vpop.f32.mrf.mxu0
        %v553 = vadd.f32 %v396, %v552
        %v554 = vand.u32 %v330, 4294901760
        %555 = vmatmul.f32.gmra.mxu0 %v554
        %v556 = vpop.f32.mrf.mxu0
        %v557 = vadd.f32 %v404, %v556
        %v558 = vand.u32 %v333, 4294901760
        %559 = vmatmul.f32.gmra.mxu0 %v558
        %v560 = vpop.f32.mrf.mxu0
        %v561 = vadd.f32 %v412, %v560
        %v562 = vand.u32 %v336, 4294901760
        %563 = vmatmul.f32.gmra.mxu0 %v562
        %v564 = vpop.f32.mrf.mxu0
        %v565 = vadd.f32 %v420, %v564
        %v566 = vand.u32 %v339, 4294901760
        %567 = vmatmul.f32.gmra.mxu0 %v566
        %v568 = vpop.f32.mrf.mxu0
        %v569 = vadd.f32 %v428, %v568
        %v570 = vand.u32 %v342, 4294901760
        %571 = vmatmul.f32.gmra.mxu0 %v570
        %v572 = vpop.f32.mrf.mxu0
        %v573 = vadd.f32 %v436, %v572
        %v574 = vand.u32 %v345, 4294901760
        %575 = vmatmul.f32.gmra.mxu0 %v574
        %v576 = vpop.f32.mrf.mxu0
        %v577 = vadd.f32 %v444, %v576
        %v578 = vand.u32 %v348, 4294901760
        %579 = vmatmul.f32.gmra.mxu0 %v578
        %v580 = vpop.f32.mrf.mxu0
        %v581 = vadd.f32 %v452, %v580
        %v582 = vand.u32 %v351, 4294901760
        %583 = vmatmul.f32.gmra.mxu0 %v582
        %v584 = vpop.f32.mrf.mxu0
        %v585 = vadd.f32 %v460, %v584
        %v586 = vand.u32 %v354, 4294901760
        %587 = vmatmul.f32.gmra.mxu0 %v586
        %v588 = vpop.f32.mrf.mxu0
        %v589 = vadd.f32 %v468, %v588
        %v590 = vand.u32 %v357, 4294901760
        %591 = vmatmul.f32.gmra.mxu0 %v590
        %v592 = vpop.f32.mrf.mxu0
        %v593 = vadd.f32 %v476, %v592
        %v594 = vand.u32 %v360, 4294901760
        %595 = vmatmul.f32.gmra.mxu0 %v594
        %v596 = vpop.f32.mrf.mxu0
        %v597 = vadd.f32 %v484, %v596
        %v598 = vand.u32 %v363, 4294901760
        %599 = vmatmul.f32.gmra.mxu0 %v598
        %v600 = vpop.f32.mrf.mxu0
        %v601 = vadd.f32 %v492, %v600
        %602 = vdwg.mxu0
        %603 = vmatpush.msra.mxu0 0.0
        %604 = vmatpush.msra.mxu0 0.0
        %605 = vmatpush.msra.mxu0 0.0
        %606 = vmatpush.msra.mxu0 0.0
        %607 = vmatpush.msra.mxu0 0.0
        %608 = vmatpush.msra.mxu0 0.0
        %609 = vmatpush.msra.mxu0 0.0
        %610 = vmatpush.msra.mxu0 0.0
        %v611 = vand.u32 %v320, 4294901760
        %v612 = vsub.f32 %v320, %v611
        %613 = vmatpush.msra.mxu0 %v612
        %v614 = vand.u32 %v319, 4294901760
        %v615 = vsub.f32 %v319, %v614
        %616 = vmatpush.msra.mxu0 %v615
        %v617 = vand.u32 %v318, 4294901760
        %v618 = vsub.f32 %v318, %v617
        %619 = vmatpush.msra.mxu0 %v618
        %v620 = vand.u32 %v317, 4294901760
        %v621 = vsub.f32 %v317, %v620
        %622 = vmatpush.msra.mxu0 %v621
        %v623 = vand.u32 %v316, 4294901760
        %v624 = vsub.f32 %v316, %v623
        %625 = vmatpush.msra.mxu0 %v624
        %v626 = vand.u32 %v315, 4294901760
        %v627 = vsub.f32 %v315, %v626
        %628 = vmatpush.msra.mxu0 %v627
        %v629 = vand.u32 %v314, 4294901760
        %v630 = vsub.f32 %v314, %v629
        %631 = vmatpush.msra.mxu0 %v630
        %v632 = vand.u32 %v313, 4294901760
        %v633 = vsub.f32 %v313, %v632
        %634 = vmatpush.msra.mxu0 %v633
        %v635 = vand.u32 %v327, 4294901760
        %v636 = vsub.f32 %v327, %v635
        %637 = vmatmul.f32.gmra.mxu0 %v636
        %v638 = vpop.f32.mrf.mxu0
        %v639 = vadd.f32 %v553, %v638
        %v640 = vand.u32 %v330, 4294901760
        %v641 = vsub.f32 %v330, %v640
        %642 = vmatmul.f32.gmra.mxu0 %v641
        %v643 = vpop.f32.mrf.mxu0
        %v644 = vadd.f32 %v557, %v643
        %v645 = vand.u32 %v333, 4294901760
        %v646 = vsub.f32 %v333, %v645
        %647 = vmatmul.f32.gmra.mxu0 %v646
        %v648 = vpop.f32.mrf.mxu0
        %v649 = vadd.f32 %v561, %v648
        %v650 = vand.u32 %v336, 4294901760
        %v651 = vsub.f32 %v336, %v650
        %652 = vmatmul.f32.gmra.mxu0 %v651
        %v653 = vpop.f32.mrf.mxu0
        %v654 = vadd.f32 %v565, %v653
        %v655 = vand.u32 %v339, 4294901760
        %v656 = vsub.f32 %v339, %v655
        %657 = vmatmul.f32.gmra.mxu0 %v656
        %v658 = vpop.f32.mrf.mxu0
        %v659 = vadd.f32 %v569, %v658
        %v660 = vand.u32 %v342, 4294901760
        %v661 = vsub.f32 %v342, %v660
        %662 = vmatmul.f32.gmra.mxu0 %v661
        %v663 = vpop.f32.mrf.mxu0
        %v664 = vadd.f32 %v573, %v663
        %v665 = vand.u32 %v345, 4294901760
        %v666 = vsub.f32 %v345, %v665
        %667 = vmatmul.f32.gmra.mxu0 %v666
        %v668 = vpop.f32.mrf.mxu0
        %v669 = vadd.f32 %v577, %v668
        %v670 = vand.u32 %v348, 4294901760
        %v671 = vsub.f32 %v348, %v670
        %672 = vmatmul.f32.gmra.mxu0 %v671
        %v673 = vpop.f32.mrf.mxu0
        %v674 = vadd.f32 %v581, %v673
        %v675 = vand.u32 %v351, 4294901760
        %v676 = vsub.f32 %v351, %v675
        %677 = vmatmul.f32.gmra.mxu0 %v676
        %v678 = vpop.f32.mrf.mxu0
        %v679 = vadd.f32 %v585, %v678
        %v680 = vand.u32 %v354, 4294901760
        %v681 = vsub.f32 %v354, %v680
        %682 = vmatmul.f32.gmra.mxu0 %v681
        %v683 = vpop.f32.mrf.mxu0
        %v684 = vadd.f32 %v589, %v683
        %v685 = vand.u32 %v357, 4294901760
        %v686 = vsub.f32 %v357, %v685
        %687 = vmatmul.f32.gmra.mxu0 %v686
        %v688 = vpop.f32.mrf.mxu0
        %v689 = vadd.f32 %v593, %v688
        %v690 = vand.u32 %v360, 4294901760
        %v691 = vsub.f32 %v360, %v690
        %692 = vmatmul.f32.gmra.mxu0 %v691
        %v693 = vpop.f32.mrf.mxu0
        %v694 = vadd.f32 %v597, %v693
        %v695 = vand.u32 %v363, 4294901760
        %v696 = vsub.f32 %v363, %v695
        %697 = vmatmul.f32.gmra.mxu0 %v696
        %v698 = vpop.f32.mrf.mxu0
        %v699 = vadd.f32 %v601, %v698
        %700 = vdwg.mxu0
        %701 = vmatpush.msra.mxu0 0.0
        %702 = vmatpush.msra.mxu0 0.0
        %703 = vmatpush.msra.mxu0 0.0
        %704 = vmatpush.msra.mxu0 0.0
        %705 = vmatpush.msra.mxu0 0.0
        %706 = vmatpush.msra.mxu0 0.0
        %707 = vmatpush.msra.mxu0 0.0
        %708 = vmatpush.msra.mxu0 0.0
        %v709 = vand.u32 %v320, 4294901760
        %710 = vmatpush.msra.mxu0 %v709
        %v711 = vand.u32 %v319, 4294901760
        %712 = vmatpush.msra.mxu0 %v711
        %v713 = vand.u32 %v318, 4294901760
        %714 = vmatpush.msra.mxu0 %v713
        %v715 = vand.u32 %v317, 4294901760
        %716 = vmatpush.msra.mxu0 %v715
        %v717 = vand.u32 %v316, 4294901760
        %718 = vmatpush.msra.mxu0 %v717
        %v719 = vand.u32 %v315, 4294901760
        %720 = vmatpush.msra.mxu0 %v719
        %v721 = vand.u32 %v314, 4294901760
        %722 = vmatpush.msra.mxu0 %v721
        %v723 = vand.u32 %v313, 4294901760
        %724 = vmatpush.msra.mxu0 %v723
        %v725 = vand.u32 %v327, 4294901760
        %v726 = vsub.f32 %v327, %v725
        %v727 = vand.u32 %v726, 4294901760
        %728 = vmatmul.f32.gmra.mxu0 %v727
        %v729 = vpop.f32.mrf.mxu0
        %v730 = vadd.f32 %v639, %v729
        %v731 = vand.u32 %v330, 4294901760
        %v732 = vsub.f32 %v330, %v731
        %v733 = vand.u32 %v732, 4294901760
        %734 = vmatmul.f32.gmra.mxu0 %v733
        %v735 = vpop.f32.mrf.mxu0
        %v736 = vadd.f32 %v644, %v735
        %v737 = vand.u32 %v333, 4294901760
        %v738 = vsub.f32 %v333, %v737
        %v739 = vand.u32 %v738, 4294901760
        %740 = vmatmul.f32.gmra.mxu0 %v739
        %v741 = vpop.f32.mrf.mxu0
        %v742 = vadd.f32 %v649, %v741
        %v743 = vand.u32 %v336, 4294901760
        %v744 = vsub.f32 %v336, %v743
        %v745 = vand.u32 %v744, 4294901760
        %746 = vmatmul.f32.gmra.mxu0 %v745
        %v747 = vpop.f32.mrf.mxu0
        %v748 = vadd.f32 %v654, %v747
        %v749 = vand.u32 %v339, 4294901760
        %v750 = vsub.f32 %v339, %v749
        %v751 = vand.u32 %v750, 4294901760
        %752 = vmatmul.f32.gmra.mxu0 %v751
        %v753 = vpop.f32.mrf.mxu0
        %v754 = vadd.f32 %v659, %v753
        %v755 = vand.u32 %v342, 4294901760
        %v756 = vsub.f32 %v342, %v755
        %v757 = vand.u32 %v756, 4294901760
        %758 = vmatmul.f32.gmra.mxu0 %v757
        %v759 = vpop.f32.mrf.mxu0
        %v760 = vadd.f32 %v664, %v759
        %v761 = vand.u32 %v345, 4294901760
        %v762 = vsub.f32 %v345, %v761
        %v763 = vand.u32 %v762, 4294901760
        %764 = vmatmul.f32.gmra.mxu0 %v763
        %v765 = vpop.f32.mrf.mxu0
        %v766 = vadd.f32 %v669, %v765
        %v767 = vand.u32 %v348, 4294901760
        %v768 = vsub.f32 %v348, %v767
        %v769 = vand.u32 %v768, 4294901760
        %770 = vmatmul.f32.gmra.mxu0 %v769
        %v771 = vpop.f32.mrf.mxu0
        %v772 = vadd.f32 %v674, %v771
        %v773 = vand.u32 %v351, 4294901760
        %v774 = vsub.f32 %v351, %v773
        %v775 = vand.u32 %v774, 4294901760
        %776 = vmatmul.f32.gmra.mxu0 %v775
        %v777 = vpop.f32.mrf.mxu0
        %v778 = vadd.f32 %v679, %v777
        %v779 = vand.u32 %v354, 4294901760
        %v780 = vsub.f32 %v354, %v779
        %v781 = vand.u32 %v780, 4294901760
        %782 = vmatmul.f32.gmra.mxu0 %v781
        %v783 = vpop.f32.mrf.mxu0
        %v784 = vadd.f32 %v684, %v783
        %v785 = vand.u32 %v357, 4294901760
        %v786 = vsub.f32 %v357, %v785
        %v787 = vand.u32 %v786, 4294901760
        %788 = vmatmul.f32.gmra.mxu0 %v787
        %v789 = vpop.f32.mrf.mxu0
        %v790 = vadd.f32 %v689, %v789
        %v791 = vand.u32 %v360, 4294901760
        %v792 = vsub.f32 %v360, %v791
        %v793 = vand.u32 %v792, 4294901760
        %794 = vmatmul.f32.gmra.mxu0 %v793
        %v795 = vpop.f32.mrf.mxu0
        %v796 = vadd.f32 %v694, %v795
        %v797 = vand.u32 %v363, 4294901760
        %v798 = vsub.f32 %v363, %v797
        %v799 = vand.u32 %v798, 4294901760
        %800 = vmatmul.f32.gmra.mxu0 %v799
        %v801 = vpop.f32.mrf.mxu0
        %v802 = vadd.f32 %v699, %v801
        %803 = vdwg.mxu0
        %804 = vmatpush.msra.mxu0 0.0
        %805 = vmatpush.msra.mxu0 0.0
        %806 = vmatpush.msra.mxu0 0.0
        %807 = vmatpush.msra.mxu0 0.0
        %808 = vmatpush.msra.mxu0 0.0
        %809 = vmatpush.msra.mxu0 0.0
        %810 = vmatpush.msra.mxu0 0.0
        %811 = vmatpush.msra.mxu0 0.0
        %v812 = vand.u32 %v320, 4294901760
        %v813 = vsub.f32 %v320, %v812
        %v814 = vand.u32 %v813, 4294901760
        %815 = vmatpush.msra.mxu0 %v814
        %v816 = vand.u32 %v319, 4294901760
        %v817 = vsub.f32 %v319, %v816
        %v818 = vand.u32 %v817, 4294901760
        %819 = vmatpush.msra.mxu0 %v818
        %v820 = vand.u32 %v318, 4294901760
        %v821 = vsub.f32 %v318, %v820
        %v822 = vand.u32 %v821, 4294901760
        %823 = vmatpush.msra.mxu0 %v822
        %v824 = vand.u32 %v317, 4294901760
        %v825 = vsub.f32 %v317, %v824
        %v826 = vand.u32 %v825, 4294901760
        %827 = vmatpush.msra.mxu0 %v826
        %v828 = vand.u32 %v316, 4294901760
        %v829 = vsub.f32 %v316, %v828
        %v830 = vand.u32 %v829, 4294901760
        %831 = vmatpush.msra.mxu0 %v830
        %v832 = vand.u32 %v315, 4294901760
        %v833 = vsub.f32 %v315, %v832
        %v834 = vand.u32 %v833, 4294901760
        %835 = vmatpush.msra.mxu0 %v834
        %v836 = vand.u32 %v314, 4294901760
        %v837 = vsub.f32 %v314, %v836
        %v838 = vand.u32 %v837, 4294901760
        %839 = vmatpush.msra.mxu0 %v838
        %v840 = vand.u32 %v313, 4294901760
        %v841 = vsub.f32 %v313, %v840
        %v842 = vand.u32 %v841, 4294901760
        %843 = vmatpush.msra.mxu0 %v842
        %v844 = vand.u32 %v327, 4294901760
        %845 = vmatmul.f32.gmra.mxu0 %v844
        %v846 = vpop.f32.mrf.mxu0
        %v847 = vadd.f32 %v730, %v846
        %v848 = vand.u32 %v330, 4294901760
        %849 = vmatmul.f32.gmra.mxu0 %v848
        %v850 = vpop.f32.mrf.mxu0
        %v851 = vadd.f32 %v736, %v850
        %v852 = vand.u32 %v333, 4294901760
        %853 = vmatmul.f32.gmra.mxu0 %v852
        %v854 = vpop.f32.mrf.mxu0
        %v855 = vadd.f32 %v742, %v854
        %v856 = vand.u32 %v336, 4294901760
        %857 = vmatmul.f32.gmra.mxu0 %v856
        %v858 = vpop.f32.mrf.mxu0
        %v859 = vadd.f32 %v748, %v858
        %v860 = vand.u32 %v339, 4294901760
        %861 = vmatmul.f32.gmra.mxu0 %v860
        %v862 = vpop.f32.mrf.mxu0
        %v863 = vadd.f32 %v754, %v862
        %v864 = vand.u32 %v342, 4294901760
        %865 = vmatmul.f32.gmra.mxu0 %v864
        %v866 = vpop.f32.mrf.mxu0
        %v867 = vadd.f32 %v760, %v866
        %v868 = vand.u32 %v345, 4294901760
        %869 = vmatmul.f32.gmra.mxu0 %v868
        %v870 = vpop.f32.mrf.mxu0
        %v871 = vadd.f32 %v766, %v870
        %v872 = vand.u32 %v348, 4294901760
        %873 = vmatmul.f32.gmra.mxu0 %v872
        %v874 = vpop.f32.mrf.mxu0
        %v875 = vadd.f32 %v772, %v874
        %v876 = vand.u32 %v351, 4294901760
        %877 = vmatmul.f32.gmra.mxu0 %v876
        %v878 = vpop.f32.mrf.mxu0
        %v879 = vadd.f32 %v778, %v878
        %v880 = vand.u32 %v354, 4294901760
        %881 = vmatmul.f32.gmra.mxu0 %v880
        %v882 = vpop.f32.mrf.mxu0
        %v883 = vadd.f32 %v784, %v882
        %v884 = vand.u32 %v357, 4294901760
        %885 = vmatmul.f32.gmra.mxu0 %v884
        %v886 = vpop.f32.mrf.mxu0
        %v887 = vadd.f32 %v790, %v886
        %v888 = vand.u32 %v360, 4294901760
        %889 = vmatmul.f32.gmra.mxu0 %v888
        %v890 = vpop.f32.mrf.mxu0
        %v891 = vadd.f32 %v796, %v890
        %v892 = vand.u32 %v363, 4294901760
        %893 = vmatmul.f32.gmra.mxu0 %v892
        %v894 = vpop.f32.mrf.mxu0
        %v895 = vadd.f32 %v802, %v894
        %896 = vdwg.mxu0
        %897 = vmatpush.msra.mxu0 0.0
        %898 = vmatpush.msra.mxu0 0.0
        %899 = vmatpush.msra.mxu0 0.0
        %900 = vmatpush.msra.mxu0 0.0
        %901 = vmatpush.msra.mxu0 0.0
        %902 = vmatpush.msra.mxu0 0.0
        %903 = vmatpush.msra.mxu0 0.0
        %904 = vmatpush.msra.mxu0 0.0
        %v905 = vand.u32 %v320, 4294901760
        %906 = vmatpush.msra.mxu0 %v905
        %v907 = vand.u32 %v319, 4294901760
        %908 = vmatpush.msra.mxu0 %v907
        %v909 = vand.u32 %v318, 4294901760
        %910 = vmatpush.msra.mxu0 %v909
        %v911 = vand.u32 %v317, 4294901760
        %912 = vmatpush.msra.mxu0 %v911
        %v913 = vand.u32 %v316, 4294901760
        %914 = vmatpush.msra.mxu0 %v913
        %v915 = vand.u32 %v315, 4294901760
        %916 = vmatpush.msra.mxu0 %v915
        %v917 = vand.u32 %v314, 4294901760
        %918 = vmatpush.msra.mxu0 %v917
        %v919 = vand.u32 %v313, 4294901760
        %920 = vmatpush.msra.mxu0 %v919
        %v921 = vand.u32 %v327, 4294901760
        %922 = vmatmul.f32.gmra.mxu0 %v921
        %v923 = vpop.f32.mrf.mxu0
        %v924 = vadd.f32 %v847, %v923
        %v925 = vand.u32 %v330, 4294901760
        %926 = vmatmul.f32.gmra.mxu0 %v925
        %v927 = vpop.f32.mrf.mxu0
        %v928 = vadd.f32 %v851, %v927
        %v929 = vand.u32 %v333, 4294901760
        %930 = vmatmul.f32.gmra.mxu0 %v929
        %v931 = vpop.f32.mrf.mxu0
        %v932 = vadd.f32 %v855, %v931
        %v933 = vand.u32 %v336, 4294901760
        %934 = vmatmul.f32.gmra.mxu0 %v933
        %v935 = vpop.f32.mrf.mxu0
        %v936 = vadd.f32 %v859, %v935
        %v937 = vand.u32 %v339, 4294901760
        %938 = vmatmul.f32.gmra.mxu0 %v937
        %v939 = vpop.f32.mrf.mxu0
        %v940 = vadd.f32 %v863, %v939
        %v941 = vand.u32 %v342, 4294901760
        %942 = vmatmul.f32.gmra.mxu0 %v941
        %v943 = vpop.f32.mrf.mxu0
        %v944 = vadd.f32 %v867, %v943
        %v945 = vand.u32 %v345, 4294901760
        %946 = vmatmul.f32.gmra.mxu0 %v945
        %v947 = vpop.f32.mrf.mxu0
        %v948 = vadd.f32 %v871, %v947
        %v949 = vand.u32 %v348, 4294901760
        %950 = vmatmul.f32.gmra.mxu0 %v949
        %v951 = vpop.f32.mrf.mxu0
        %v952 = vadd.f32 %v875, %v951
        %v953 = vand.u32 %v351, 4294901760
        %954 = vmatmul.f32.gmra.mxu0 %v953
        %v955 = vpop.f32.mrf.mxu0
        %v956 = vadd.f32 %v879, %v955
        %v957 = vand.u32 %v354, 4294901760
        %958 = vmatmul.f32.gmra.mxu0 %v957
        %v959 = vpop.f32.mrf.mxu0
        %v960 = vadd.f32 %v883, %v959
        %v961 = vand.u32 %v357, 4294901760
        %962 = vmatmul.f32.gmra.mxu0 %v961
        %v963 = vpop.f32.mrf.mxu0
        %v964 = vadd.f32 %v887, %v963
        %v965 = vand.u32 %v360, 4294901760
        %966 = vmatmul.f32.gmra.mxu0 %v965
        %v967 = vpop.f32.mrf.mxu0
        %v968 = vadd.f32 %v891, %v967
        %v969 = vand.u32 %v363, 4294901760
        %970 = vmatmul.f32.gmra.mxu0 %v969
        %v971 = vpop.f32.mrf.mxu0
        %v972 = vadd.f32 %v895, %v971
        %973 = vdwg.mxu0
        %v974 = vmax.f32 %v924, 0.0
        %v975 = vmax.f32 %v928, 0.0
        %v976 = vmax.f32 %v932, 0.0
        %v977 = vmax.f32 %v936, 0.0
        %v978 = vmax.f32 %v940, 0.0
        %v979 = vmax.f32 %v944, 0.0
        %v980 = vmax.f32 %v948, 0.0
        %v981 = vmax.f32 %v952, 0.0
        %v982 = vmax.f32 %v956, 0.0
        %v983 = vmax.f32 %v960, 0.0
        %v984 = vmax.f32 %v964, 0.0
        %v985 = vmax.f32 %v968, 0.0
        %v986 = vmax.f32 %v972, 0.0
        %v987 = vld [vmem:[%s3] sm:$0xff]
        %v988 = vld [vmem:[%s3 + $0x8] sm:$0xff]
        %v989 = vld [vmem:[%s3 + $0x10] sm:$0xff]
        %v990 = vld [vmem:[%s3 + $0x18] sm:$0xff]
        %v991 = vld [vmem:[%s3 + $0x20] sm:$0xff]
        %v992 = vld [vmem:[%s3 + $0x28] sm:$0xff]
        %v993 = vld [vmem:[%s3 + $0x30] sm:$0xff]
        %v994 = vld [vmem:[%s3 + $0x38] sm:$0xff]
        %v995 = vld [vmem:[%s4] sm:$0x1]
        %v997 = vperm.slane %v995, 0
        %v1000 = vsel %vm325, %v974, 0
        %v1003 = vsel %vm325, %v975, 0
        %v1006 = vsel %vm325, %v976, 0
        %v1009 = vsel %vm325, %v977, 0
        %v1012 = vsel %vm325, %v978, 0
        %v1015 = vsel %vm325, %v979, 0
        %v1018 = vsel %vm325, %v980, 0
        %v1021 = vsel %vm325, %v981, 0
        %v1024 = vsel %vm325, %v982, 0
        %v1027 = vsel %vm325, %v983, 0
        %v1030 = vsel %vm325, %v984, 0
        %v1033 = vsel %vm325, %v985, 0
        %v1036 = vsel %vm325, %v986, 0
        %1038 = vmatpush.msra.mxu0 0.0
        %1039 = vmatpush.msra.mxu0 0.0
        %1040 = vmatpush.msra.mxu0 0.0
        %1041 = vmatpush.msra.mxu0 0.0
        %1042 = vmatpush.msra.mxu0 0.0
        %1043 = vmatpush.msra.mxu0 0.0
        %1044 = vmatpush.msra.mxu0 0.0
        %1045 = vmatpush.msra.mxu0 0.0
        %v1046 = vand.u32 %v994, 4294901760
        %1047 = vmatpush.msra.mxu0 %v1046
        %v1048 = vand.u32 %v993, 4294901760
        %1049 = vmatpush.msra.mxu0 %v1048
        %v1050 = vand.u32 %v992, 4294901760
        %1051 = vmatpush.msra.mxu0 %v1050
        %v1052 = vand.u32 %v991, 4294901760
        %1053 = vmatpush.msra.mxu0 %v1052
        %v1054 = vand.u32 %v990, 4294901760
        %1055 = vmatpush.msra.mxu0 %v1054
        %v1056 = vand.u32 %v989, 4294901760
        %1057 = vmatpush.msra.mxu0 %v1056
        %v1058 = vand.u32 %v988, 4294901760
        %1059 = vmatpush.msra.mxu0 %v1058
        %v1060 = vand.u32 %v987, 4294901760
        %1061 = vmatpush.msra.mxu0 %v1060
        %v1062 = vand.u32 %v1000, 4294901760
        %v1063 = vsub.f32 %v1000, %v1062
        %v1064 = vand.u32 %v1063, 4294901760
        %v1065 = vsub.f32 %v1063, %v1064
        %v1066 = vand.u32 %v1065, 4294901760
        %1067 = vmatmul.f32.gmra.mxu0 %v1066
        %v1068 = vpop.f32.mrf.mxu0
        %v1069 = vadd.f32 %v997, %v1068
        %v1070 = vand.u32 %v1003, 4294901760
        %v1071 = vsub.f32 %v1003, %v1070
        %v1072 = vand.u32 %v1071, 4294901760
        %v1073 = vsub.f32 %v1071, %v1072
        %v1074 = vand.u32 %v1073, 4294901760
        %1075 = vmatmul.f32.gmra.mxu0 %v1074
        %v1076 = vpop.f32.mrf.mxu0
        %v1077 = vadd.f32 %v997, %v1076
        %v1078 = vand.u32 %v1006, 4294901760
        %v1079 = vsub.f32 %v1006, %v1078
        %v1080 = vand.u32 %v1079, 4294901760
        %v1081 = vsub.f32 %v1079, %v1080
        %v1082 = vand.u32 %v1081, 4294901760
        %1083 = vmatmul.f32.gmra.mxu0 %v1082
        %v1084 = vpop.f32.mrf.mxu0
        %v1085 = vadd.f32 %v997, %v1084
        %v1086 = vand.u32 %v1009, 4294901760
        %v1087 = vsub.f32 %v1009, %v1086
        %v1088 = vand.u32 %v1087, 4294901760
        %v1089 = vsub.f32 %v1087, %v1088
        %v1090 = vand.u32 %v1089, 4294901760
        %1091 = vmatmul.f32.gmra.mxu0 %v1090
        %v1092 = vpop.f32.mrf.mxu0
        %v1093 = vadd.f32 %v997, %v1092
        %v1094 = vand.u32 %v1012, 4294901760
        %v1095 = vsub.f32 %v1012, %v1094
        %v1096 = vand.u32 %v1095, 4294901760
        %v1097 = vsub.f32 %v1095, %v1096
        %v1098 = vand.u32 %v1097, 4294901760
        %1099 = vmatmul.f32.gmra.mxu0 %v1098
        %v1100 = vpop.f32.mrf.mxu0
        %v1101 = vadd.f32 %v997, %v1100
        %v1102 = vand.u32 %v1015, 4294901760
        %v1103 = vsub.f32 %v1015, %v1102
        %v1104 = vand.u32 %v1103, 4294901760
        %v1105 = vsub.f32 %v1103, %v1104
        %v1106 = vand.u32 %v1105, 4294901760
        %1107 = vmatmul.f32.gmra.mxu0 %v1106
        %v1108 = vpop.f32.mrf.mxu0
        %v1109 = vadd.f32 %v997, %v1108
        %v1110 = vand.u32 %v1018, 4294901760
        %v1111 = vsub.f32 %v1018, %v1110
        %v1112 = vand.u32 %v1111, 4294901760
        %v1113 = vsub.f32 %v1111, %v1112
        %v1114 = vand.u32 %v1113, 4294901760
        %1115 = vmatmul.f32.gmra.mxu0 %v1114
        %v1116 = vpop.f32.mrf.mxu0
        %v1117 = vadd.f32 %v997, %v1116
        %v1118 = vand.u32 %v1021, 4294901760
        %v1119 = vsub.f32 %v1021, %v1118
        %v1120 = vand.u32 %v1119, 4294901760
        %v1121 = vsub.f32 %v1119, %v1120
        %v1122 = vand.u32 %v1121, 4294901760
        %1123 = vmatmul.f32.gmra.mxu0 %v1122
        %v1124 = vpop.f32.mrf.mxu0
        %v1125 = vadd.f32 %v997, %v1124
        %v1126 = vand.u32 %v1024, 4294901760
        %v1127 = vsub.f32 %v1024, %v1126
        %v1128 = vand.u32 %v1127, 4294901760
        %v1129 = vsub.f32 %v1127, %v1128
        %v1130 = vand.u32 %v1129, 4294901760
        %1131 = vmatmul.f32.gmra.mxu0 %v1130
        %v1132 = vpop.f32.mrf.mxu0
        %v1133 = vadd.f32 %v997, %v1132
        %v1134 = vand.u32 %v1027, 4294901760
        %v1135 = vsub.f32 %v1027, %v1134
        %v1136 = vand.u32 %v1135, 4294901760
        %v1137 = vsub.f32 %v1135, %v1136
        %v1138 = vand.u32 %v1137, 4294901760
        %1139 = vmatmul.f32.gmra.mxu0 %v1138
        %v1140 = vpop.f32.mrf.mxu0
        %v1141 = vadd.f32 %v997, %v1140
        %v1142 = vand.u32 %v1030, 4294901760
        %v1143 = vsub.f32 %v1030, %v1142
        %v1144 = vand.u32 %v1143, 4294901760
        %v1145 = vsub.f32 %v1143, %v1144
        %v1146 = vand.u32 %v1145, 4294901760
        %1147 = vmatmul.f32.gmra.mxu0 %v1146
        %v1148 = vpop.f32.mrf.mxu0
        %v1149 = vadd.f32 %v997, %v1148
        %v1150 = vand.u32 %v1033, 4294901760
        %v1151 = vsub.f32 %v1033, %v1150
        %v1152 = vand.u32 %v1151, 4294901760
        %v1153 = vsub.f32 %v1151, %v1152
        %v1154 = vand.u32 %v1153, 4294901760
        %1155 = vmatmul.f32.gmra.mxu0 %v1154
        %v1156 = vpop.f32.mrf.mxu0
        %v1157 = vadd.f32 %v997, %v1156
        %v1158 = vand.u32 %v1036, 4294901760
        %v1159 = vsub.f32 %v1036, %v1158
        %v1160 = vand.u32 %v1159, 4294901760
        %v1161 = vsub.f32 %v1159, %v1160
        %v1162 = vand.u32 %v1161, 4294901760
        %1163 = vmatmul.f32.gmra.mxu0 %v1162
        %v1164 = vpop.f32.mrf.mxu0
        %v1165 = vadd.f32 %v997, %v1164
        %1166 = vdwg.mxu0
        %1167 = vmatpush.msra.mxu0 0.0
        %1168 = vmatpush.msra.mxu0 0.0
        %1169 = vmatpush.msra.mxu0 0.0
        %1170 = vmatpush.msra.mxu0 0.0
        %1171 = vmatpush.msra.mxu0 0.0
        %1172 = vmatpush.msra.mxu0 0.0
        %1173 = vmatpush.msra.mxu0 0.0
        %1174 = vmatpush.msra.mxu0 0.0
        %v1175 = vand.u32 %v994, 4294901760
        %v1176 = vsub.f32 %v994, %v1175
        %v1177 = vand.u32 %v1176, 4294901760
        %v1178 = vsub.f32 %v1176, %v1177
        %v1179 = vand.u32 %v1178, 4294901760
        %1180 = vmatpush.msra.mxu0 %v1179
        %v1181 = vand.u32 %v993, 4294901760
        %v1182 = vsub.f32 %v993, %v1181
        %v1183 = vand.u32 %v1182, 4294901760
        %v1184 = vsub.f32 %v1182, %v1183
        %v1185 = vand.u32 %v1184, 4294901760
        %1186 = vmatpush.msra.mxu0 %v1185
        %v1187 = vand.u32 %v992, 4294901760
        %v1188 = vsub.f32 %v992, %v1187
        %v1189 = vand.u32 %v1188, 4294901760
        %v1190 = vsub.f32 %v1188, %v1189
        %v1191 = vand.u32 %v1190, 4294901760
        %1192 = vmatpush.msra.mxu0 %v1191
        %v1193 = vand.u32 %v991, 4294901760
        %v1194 = vsub.f32 %v991, %v1193
        %v1195 = vand.u32 %v1194, 4294901760
        %v1196 = vsub.f32 %v1194, %v1195
        %v1197 = vand.u32 %v1196, 4294901760
        %1198 = vmatpush.msra.mxu0 %v1197
        %v1199 = vand.u32 %v990, 4294901760
        %v1200 = vsub.f32 %v990, %v1199
        %v1201 = vand.u32 %v1200, 4294901760
        %v1202 = vsub.f32 %v1200, %v1201
        %v1203 = vand.u32 %v1202, 4294901760
        %1204 = vmatpush.msra.mxu0 %v1203
        %v1205 = vand.u32 %v989, 4294901760
        %v1206 = vsub.f32 %v989, %v1205
        %v1207 = vand.u32 %v1206, 4294901760
        %v1208 = vsub.f32 %v1206, %v1207
        %v1209 = vand.u32 %v1208, 4294901760
        %1210 = vmatpush.msra.mxu0 %v1209
        %v1211 = vand.u32 %v988, 4294901760
        %v1212 = vsub.f32 %v988, %v1211
        %v1213 = vand.u32 %v1212, 4294901760
        %v1214 = vsub.f32 %v1212, %v1213
        %v1215 = vand.u32 %v1214, 4294901760
        %1216 = vmatpush.msra.mxu0 %v1215
        %v1217 = vand.u32 %v987, 4294901760
        %v1218 = vsub.f32 %v987, %v1217
        %v1219 = vand.u32 %v1218, 4294901760
        %v1220 = vsub.f32 %v1218, %v1219
        %v1221 = vand.u32 %v1220, 4294901760
        %1222 = vmatpush.msra.mxu0 %v1221
        %v1223 = vand.u32 %v1000, 4294901760
        %1224 = vmatmul.f32.gmra.mxu0 %v1223
        %v1225 = vpop.f32.mrf.mxu0
        %v1226 = vadd.f32 %v1069, %v1225
        %v1227 = vand.u32 %v1003, 4294901760
        %1228 = vmatmul.f32.gmra.mxu0 %v1227
        %v1229 = vpop.f32.mrf.mxu0
        %v1230 = vadd.f32 %v1077, %v1229
        %v1231 = vand.u32 %v1006, 4294901760
        %1232 = vmatmul.f32.gmra.mxu0 %v1231
        %v1233 = vpop.f32.mrf.mxu0
        %v1234 = vadd.f32 %v1085, %v1233
        %v1235 = vand.u32 %v1009, 4294901760
        %1236 = vmatmul.f32.gmra.mxu0 %v1235
        %v1237 = vpop.f32.mrf.mxu0
        %v1238 = vadd.f32 %v1093, %v1237
        %v1239 = vand.u32 %v1012, 4294901760
        %1240 = vmatmul.f32.gmra.mxu0 %v1239
        %v1241 = vpop.f32.mrf.mxu0
        %v1242 = vadd.f32 %v1101, %v1241
        %v1243 = vand.u32 %v1015, 4294901760
        %1244 = vmatmul.f32.gmra.mxu0 %v1243
        %v1245 = vpop.f32.mrf.mxu0
        %v1246 = vadd.f32 %v1109, %v1245
        %v1247 = vand.u32 %v1018, 4294901760
        %1248 = vmatmul.f32.gmra.mxu0 %v1247
        %v1249 = vpop.f32.mrf.mxu0
        %v1250 = vadd.f32 %v1117, %v1249
        %v1251 = vand.u32 %v1021, 4294901760
        %1252 = vmatmul.f32.gmra.mxu0 %v1251
        %v1253 = vpop.f32.mrf.mxu0
        %v1254 = vadd.f32 %v1125, %v1253
        %v1255 = vand.u32 %v1024, 4294901760
        %1256 = vmatmul.f32.gmra.mxu0 %v1255
        %v1257 = vpop.f32.mrf.mxu0
        %v1258 = vadd.f32 %v1133, %v1257
        %v1259 = vand.u32 %v1027, 4294901760
        %1260 = vmatmul.f32.gmra.mxu0 %v1259
        %v1261 = vpop.f32.mrf.mxu0
        %v1262 = vadd.f32 %v1141, %v1261
        %v1263 = vand.u32 %v1030, 4294901760
        %1264 = vmatmul.f32.gmra.mxu0 %v1263
        %v1265 = vpop.f32.mrf.mxu0
        %v1266 = vadd.f32 %v1149, %v1265
        %v1267 = vand.u32 %v1033, 4294901760
        %1268 = vmatmul.f32.gmra.mxu0 %v1267
        %v1269 = vpop.f32.mrf.mxu0
        %v1270 = vadd.f32 %v1157, %v1269
        %v1271 = vand.u32 %v1036, 4294901760
        %1272 = vmatmul.f32.gmra.mxu0 %v1271
        %v1273 = vpop.f32.mrf.mxu0
        %v1274 = vadd.f32 %v1165, %v1273
        %1275 = vdwg.mxu0
        %1276 = vmatpush.msra.mxu0 0.0
        %1277 = vmatpush.msra.mxu0 0.0
        %1278 = vmatpush.msra.mxu0 0.0
        %1279 = vmatpush.msra.mxu0 0.0
        %1280 = vmatpush.msra.mxu0 0.0
        %1281 = vmatpush.msra.mxu0 0.0
        %1282 = vmatpush.msra.mxu0 0.0
        %1283 = vmatpush.msra.mxu0 0.0
        %v1284 = vand.u32 %v994, 4294901760
        %v1285 = vsub.f32 %v994, %v1284
        %1286 = vmatpush.msra.mxu0 %v1285
        %v1287 = vand.u32 %v993, 4294901760
        %v1288 = vsub.f32 %v993, %v1287
        %1289 = vmatpush.msra.mxu0 %v1288
        %v1290 = vand.u32 %v992, 4294901760
        %v1291 = vsub.f32 %v992, %v1290
        %1292 = vmatpush.msra.mxu0 %v1291
        %v1293 = vand.u32 %v991, 4294901760
        %v1294 = vsub.f32 %v991, %v1293
        %1295 = vmatpush.msra.mxu0 %v1294
        %v1296 = vand.u32 %v990, 4294901760
        %v1297 = vsub.f32 %v990, %v1296
        %1298 = vmatpush.msra.mxu0 %v1297
        %v1299 = vand.u32 %v989, 4294901760
        %v1300 = vsub.f32 %v989, %v1299
        %1301 = vmatpush.msra.mxu0 %v1300
        %v1302 = vand.u32 %v988, 4294901760
        %v1303 = vsub.f32 %v988, %v1302
        %1304 = vmatpush.msra.mxu0 %v1303
        %v1305 = vand.u32 %v987, 4294901760
        %v1306 = vsub.f32 %v987, %v1305
        %1307 = vmatpush.msra.mxu0 %v1306
        %v1308 = vand.u32 %v1000, 4294901760
        %v1309 = vsub.f32 %v1000, %v1308
        %1310 = vmatmul.f32.gmra.mxu0 %v1309
        %v1311 = vpop.f32.mrf.mxu0
        %v1312 = vadd.f32 %v1226, %v1311
        %v1313 = vand.u32 %v1003, 4294901760
        %v1314 = vsub.f32 %v1003, %v1313
        %1315 = vmatmul.f32.gmra.mxu0 %v1314
        %v1316 = vpop.f32.mrf.mxu0
        %v1317 = vadd.f32 %v1230, %v1316
        %v1318 = vand.u32 %v1006, 4294901760
        %v1319 = vsub.f32 %v1006, %v1318
        %1320 = vmatmul.f32.gmra.mxu0 %v1319
        %v1321 = vpop.f32.mrf.mxu0
        %v1322 = vadd.f32 %v1234, %v1321
        %v1323 = vand.u32 %v1009, 4294901760
        %v1324 = vsub.f32 %v1009, %v1323
        %1325 = vmatmul.f32.gmra.mxu0 %v1324
        %v1326 = vpop.f32.mrf.mxu0
        %v1327 = vadd.f32 %v1238, %v1326
        %v1328 = vand.u32 %v1012, 4294901760
        %v1329 = vsub.f32 %v1012, %v1328
        %1330 = vmatmul.f32.gmra.mxu0 %v1329
        %v1331 = vpop.f32.mrf.mxu0
        %v1332 = vadd.f32 %v1242, %v1331
        %v1333 = vand.u32 %v1015, 4294901760
        %v1334 = vsub.f32 %v1015, %v1333
        %1335 = vmatmul.f32.gmra.mxu0 %v1334
        %v1336 = vpop.f32.mrf.mxu0
        %v1337 = vadd.f32 %v1246, %v1336
        %v1338 = vand.u32 %v1018, 4294901760
        %v1339 = vsub.f32 %v1018, %v1338
        %1340 = vmatmul.f32.gmra.mxu0 %v1339
        %v1341 = vpop.f32.mrf.mxu0
        %v1342 = vadd.f32 %v1250, %v1341
        %v1343 = vand.u32 %v1021, 4294901760
        %v1344 = vsub.f32 %v1021, %v1343
        %1345 = vmatmul.f32.gmra.mxu0 %v1344
        %v1346 = vpop.f32.mrf.mxu0
        %v1347 = vadd.f32 %v1254, %v1346
        %v1348 = vand.u32 %v1024, 4294901760
        %v1349 = vsub.f32 %v1024, %v1348
        %1350 = vmatmul.f32.gmra.mxu0 %v1349
        %v1351 = vpop.f32.mrf.mxu0
        %v1352 = vadd.f32 %v1258, %v1351
        %v1353 = vand.u32 %v1027, 4294901760
        %v1354 = vsub.f32 %v1027, %v1353
        %1355 = vmatmul.f32.gmra.mxu0 %v1354
        %v1356 = vpop.f32.mrf.mxu0
        %v1357 = vadd.f32 %v1262, %v1356
        %v1358 = vand.u32 %v1030, 4294901760
        %v1359 = vsub.f32 %v1030, %v1358
        %1360 = vmatmul.f32.gmra.mxu0 %v1359
        %v1361 = vpop.f32.mrf.mxu0
        %v1362 = vadd.f32 %v1266, %v1361
        %v1363 = vand.u32 %v1033, 4294901760
        %v1364 = vsub.f32 %v1033, %v1363
        %1365 = vmatmul.f32.gmra.mxu0 %v1364
        %v1366 = vpop.f32.mrf.mxu0
        %v1367 = vadd.f32 %v1270, %v1366
        %v1368 = vand.u32 %v1036, 4294901760
        %v1369 = vsub.f32 %v1036, %v1368
        %1370 = vmatmul.f32.gmra.mxu0 %v1369
        %v1371 = vpop.f32.mrf.mxu0
        %v1372 = vadd.f32 %v1274, %v1371
        %1373 = vdwg.mxu0
        %1374 = vmatpush.msra.mxu0 0.0
        %1375 = vmatpush.msra.mxu0 0.0
        %1376 = vmatpush.msra.mxu0 0.0
        %1377 = vmatpush.msra.mxu0 0.0
        %1378 = vmatpush.msra.mxu0 0.0
        %1379 = vmatpush.msra.mxu0 0.0
        %1380 = vmatpush.msra.mxu0 0.0
        %1381 = vmatpush.msra.mxu0 0.0
        %v1382 = vand.u32 %v994, 4294901760
        %1383 = vmatpush.msra.mxu0 %v1382
        %v1384 = vand.u32 %v993, 4294901760
        %1385 = vmatpush.msra.mxu0 %v1384
        %v1386 = vand.u32 %v992, 4294901760
        %1387 = vmatpush.msra.mxu0 %v1386
        %v1388 = vand.u32 %v991, 4294901760
        %1389 = vmatpush.msra.mxu0 %v1388
        %v1390 = vand.u32 %v990, 4294901760
        %1391 = vmatpush.msra.mxu0 %v1390
        %v1392 = vand.u32 %v989, 4294901760
        %1393 = vmatpush.msra.mxu0 %v1392
        %v1394 = vand.u32 %v988, 4294901760
        %1395 = vmatpush.msra.mxu0 %v1394
        %v1396 = vand.u32 %v987, 4294901760
        %1397 = vmatpush.msra.mxu0 %v1396
        %v1398 = vand.u32 %v1000, 4294901760
        %v1399 = vsub.f32 %v1000, %v1398
        %v1400 = vand.u32 %v1399, 4294901760
        %1401 = vmatmul.f32.gmra.mxu0 %v1400
        %v1402 = vpop.f32.mrf.mxu0
        %v1403 = vadd.f32 %v1312, %v1402
        %v1404 = vand.u32 %v1003, 4294901760
        %v1405 = vsub.f32 %v1003, %v1404
        %v1406 = vand.u32 %v1405, 4294901760
        %1407 = vmatmul.f32.gmra.mxu0 %v1406
        %v1408 = vpop.f32.mrf.mxu0
        %v1409 = vadd.f32 %v1317, %v1408
        %v1410 = vand.u32 %v1006, 4294901760
        %v1411 = vsub.f32 %v1006, %v1410
        %v1412 = vand.u32 %v1411, 4294901760
        %1413 = vmatmul.f32.gmra.mxu0 %v1412
        %v1414 = vpop.f32.mrf.mxu0
        %v1415 = vadd.f32 %v1322, %v1414
        %v1416 = vand.u32 %v1009, 4294901760
        %v1417 = vsub.f32 %v1009, %v1416
        %v1418 = vand.u32 %v1417, 4294901760
        %1419 = vmatmul.f32.gmra.mxu0 %v1418
        %v1420 = vpop.f32.mrf.mxu0
        %v1421 = vadd.f32 %v1327, %v1420
        %v1422 = vand.u32 %v1012, 4294901760
        %v1423 = vsub.f32 %v1012, %v1422
        %v1424 = vand.u32 %v1423, 4294901760
        %1425 = vmatmul.f32.gmra.mxu0 %v1424
        %v1426 = vpop.f32.mrf.mxu0
        %v1427 = vadd.f32 %v1332, %v1426
        %v1428 = vand.u32 %v1015, 4294901760
        %v1429 = vsub.f32 %v1015, %v1428
        %v1430 = vand.u32 %v1429, 4294901760
        %1431 = vmatmul.f32.gmra.mxu0 %v1430
        %v1432 = vpop.f32.mrf.mxu0
        %v1433 = vadd.f32 %v1337, %v1432
        %v1434 = vand.u32 %v1018, 4294901760
        %v1435 = vsub.f32 %v1018, %v1434
        %v1436 = vand.u32 %v1435, 4294901760
        %1437 = vmatmul.f32.gmra.mxu0 %v1436
        %v1438 = vpop.f32.mrf.mxu0
        %v1439 = vadd.f32 %v1342, %v1438
        %v1440 = vand.u32 %v1021, 4294901760
        %v1441 = vsub.f32 %v1021, %v1440
        %v1442 = vand.u32 %v1441, 4294901760
        %1443 = vmatmul.f32.gmra.mxu0 %v1442
        %v1444 = vpop.f32.mrf.mxu0
        %v1445 = vadd.f32 %v1347, %v1444
        %v1446 = vand.u32 %v1024, 4294901760
        %v1447 = vsub.f32 %v1024, %v1446
        %v1448 = vand.u32 %v1447, 4294901760
        %1449 = vmatmul.f32.gmra.mxu0 %v1448
        %v1450 = vpop.f32.mrf.mxu0
        %v1451 = vadd.f32 %v1352, %v1450
        %v1452 = vand.u32 %v1027, 4294901760
        %v1453 = vsub.f32 %v1027, %v1452
        %v1454 = vand.u32 %v1453, 4294901760
        %1455 = vmatmul.f32.gmra.mxu0 %v1454
        %v1456 = vpop.f32.mrf.mxu0
        %v1457 = vadd.f32 %v1357, %v1456
        %v1458 = vand.u32 %v1030, 4294901760
        %v1459 = vsub.f32 %v1030, %v1458
        %v1460 = vand.u32 %v1459, 4294901760
        %1461 = vmatmul.f32.gmra.mxu0 %v1460
        %v1462 = vpop.f32.mrf.mxu0
        %v1463 = vadd.f32 %v1362, %v1462
        %v1464 = vand.u32 %v1033, 4294901760
        %v1465 = vsub.f32 %v1033, %v1464
        %v1466 = vand.u32 %v1465, 4294901760
        %1467 = vmatmul.f32.gmra.mxu0 %v1466
        %v1468 = vpop.f32.mrf.mxu0
        %v1469 = vadd.f32 %v1367, %v1468
        %v1470 = vand.u32 %v1036, 4294901760
        %v1471 = vsub.f32 %v1036, %v1470
        %v1472 = vand.u32 %v1471, 4294901760
        %1473 = vmatmul.f32.gmra.mxu0 %v1472
        %v1474 = vpop.f32.mrf.mxu0
        %v1475 = vadd.f32 %v1372, %v1474
        %1476 = vdwg.mxu0
        %1477 = vmatpush.msra.mxu0 0.0
        %1478 = vmatpush.msra.mxu0 0.0
        %1479 = vmatpush.msra.mxu0 0.0
        %1480 = vmatpush.msra.mxu0 0.0
        %1481 = vmatpush.msra.mxu0 0.0
        %1482 = vmatpush.msra.mxu0 0.0
        %1483 = vmatpush.msra.mxu0 0.0
        %1484 = vmatpush.msra.mxu0 0.0
        %v1485 = vand.u32 %v994, 4294901760
        %v1486 = vsub.f32 %v994, %v1485
        %v1487 = vand.u32 %v1486, 4294901760
        %1488 = vmatpush.msra.mxu0 %v1487
        %v1489 = vand.u32 %v993, 4294901760
        %v1490 = vsub.f32 %v993, %v1489
        %v1491 = vand.u32 %v1490, 4294901760
        %1492 = vmatpush.msra.mxu0 %v1491
        %v1493 = vand.u32 %v992, 4294901760
        %v1494 = vsub.f32 %v992, %v1493
        %v1495 = vand.u32 %v1494, 4294901760
        %1496 = vmatpush.msra.mxu0 %v1495
        %v1497 = vand.u32 %v991, 4294901760
        %v1498 = vsub.f32 %v991, %v1497
        %v1499 = vand.u32 %v1498, 4294901760
        %1500 = vmatpush.msra.mxu0 %v1499
        %v1501 = vand.u32 %v990, 4294901760
        %v1502 = vsub.f32 %v990, %v1501
        %v1503 = vand.u32 %v1502, 4294901760
        %1504 = vmatpush.msra.mxu0 %v1503
        %v1505 = vand.u32 %v989, 4294901760
        %v1506 = vsub.f32 %v989, %v1505
        %v1507 = vand.u32 %v1506, 4294901760
        %1508 = vmatpush.msra.mxu0 %v1507
        %v1509 = vand.u32 %v988, 4294901760
        %v1510 = vsub.f32 %v988, %v1509
        %v1511 = vand.u32 %v1510, 4294901760
        %1512 = vmatpush.msra.mxu0 %v1511
        %v1513 = vand.u32 %v987, 4294901760
        %v1514 = vsub.f32 %v987, %v1513
        %v1515 = vand.u32 %v1514, 4294901760
        %1516 = vmatpush.msra.mxu0 %v1515
        %v1517 = vand.u32 %v1000, 4294901760
        %1518 = vmatmul.f32.gmra.mxu0 %v1517
        %v1519 = vpop.f32.mrf.mxu0
        %v1520 = vadd.f32 %v1403, %v1519
        %v1521 = vand.u32 %v1003, 4294901760
        %1522 = vmatmul.f32.gmra.mxu0 %v1521
        %v1523 = vpop.f32.mrf.mxu0
        %v1524 = vadd.f32 %v1409, %v1523
        %v1525 = vand.u32 %v1006, 4294901760
        %1526 = vmatmul.f32.gmra.mxu0 %v1525
        %v1527 = vpop.f32.mrf.mxu0
        %v1528 = vadd.f32 %v1415, %v1527
        %v1529 = vand.u32 %v1009, 4294901760
        %1530 = vmatmul.f32.gmra.mxu0 %v1529
        %v1531 = vpop.f32.mrf.mxu0
        %v1532 = vadd.f32 %v1421, %v1531
        %v1533 = vand.u32 %v1012, 4294901760
        %1534 = vmatmul.f32.gmra.mxu0 %v1533
        %v1535 = vpop.f32.mrf.mxu0
        %v1536 = vadd.f32 %v1427, %v1535
        %v1537 = vand.u32 %v1015, 4294901760
        %1538 = vmatmul.f32.gmra.mxu0 %v1537
        %v1539 = vpop.f32.mrf.mxu0
        %v1540 = vadd.f32 %v1433, %v1539
        %v1541 = vand.u32 %v1018, 4294901760
        %1542 = vmatmul.f32.gmra.mxu0 %v1541
        %v1543 = vpop.f32.mrf.mxu0
        %v1544 = vadd.f32 %v1439, %v1543
        %v1545 = vand.u32 %v1021, 4294901760
        %1546 = vmatmul.f32.gmra.mxu0 %v1545
        %v1547 = vpop.f32.mrf.mxu0
        %v1548 = vadd.f32 %v1445, %v1547
        %v1549 = vand.u32 %v1024, 4294901760
        %1550 = vmatmul.f32.gmra.mxu0 %v1549
        %v1551 = vpop.f32.mrf.mxu0
        %v1552 = vadd.f32 %v1451, %v1551
        %v1553 = vand.u32 %v1027, 4294901760
        %1554 = vmatmul.f32.gmra.mxu0 %v1553
        %v1555 = vpop.f32.mrf.mxu0
        %v1556 = vadd.f32 %v1457, %v1555
        %v1557 = vand.u32 %v1030, 4294901760
        %1558 = vmatmul.f32.gmra.mxu0 %v1557
        %v1559 = vpop.f32.mrf.mxu0
        %v1560 = vadd.f32 %v1463, %v1559
        %v1561 = vand.u32 %v1033, 4294901760
        %1562 = vmatmul.f32.gmra.mxu0 %v1561
        %v1563 = vpop.f32.mrf.mxu0
        %v1564 = vadd.f32 %v1469, %v1563
        %v1565 = vand.u32 %v1036, 4294901760
        %1566 = vmatmul.f32.gmra.mxu0 %v1565
        %v1567 = vpop.f32.mrf.mxu0
        %v1568 = vadd.f32 %v1475, %v1567
        %1569 = vdwg.mxu0
        %1570 = vmatpush.msra.mxu0 0.0
        %1571 = vmatpush.msra.mxu0 0.0
        %1572 = vmatpush.msra.mxu0 0.0
        %1573 = vmatpush.msra.mxu0 0.0
        %1574 = vmatpush.msra.mxu0 0.0
        %1575 = vmatpush.msra.mxu0 0.0
        %1576 = vmatpush.msra.mxu0 0.0
        %1577 = vmatpush.msra.mxu0 0.0
        %v1578 = vand.u32 %v994, 4294901760
        %1579 = vmatpush.msra.mxu0 %v1578
        %v1580 = vand.u32 %v993, 4294901760
        %1581 = vmatpush.msra.mxu0 %v1580
        %v1582 = vand.u32 %v992, 4294901760
        %1583 = vmatpush.msra.mxu0 %v1582
        %v1584 = vand.u32 %v991, 4294901760
        %1585 = vmatpush.msra.mxu0 %v1584
        %v1586 = vand.u32 %v990, 4294901760
        %1587 = vmatpush.msra.mxu0 %v1586
        %v1588 = vand.u32 %v989, 4294901760
        %1589 = vmatpush.msra.mxu0 %v1588
        %v1590 = vand.u32 %v988, 4294901760
        %1591 = vmatpush.msra.mxu0 %v1590
        %v1592 = vand.u32 %v987, 4294901760
        %1593 = vmatpush.msra.mxu0 %v1592
        %v1594 = vand.u32 %v1000, 4294901760
        %1595 = vmatmul.f32.gmra.mxu0 %v1594
        %v1596 = vpop.f32.mrf.mxu0
        %v1597 = vadd.f32 %v1520, %v1596
        %v1598 = vand.u32 %v1003, 4294901760
        %1599 = vmatmul.f32.gmra.mxu0 %v1598
        %v1600 = vpop.f32.mrf.mxu0
        %v1601 = vadd.f32 %v1524, %v1600
        %v1602 = vand.u32 %v1006, 4294901760
        %1603 = vmatmul.f32.gmra.mxu0 %v1602
        %v1604 = vpop.f32.mrf.mxu0
        %v1605 = vadd.f32 %v1528, %v1604
        %v1606 = vand.u32 %v1009, 4294901760
        %1607 = vmatmul.f32.gmra.mxu0 %v1606
        %v1608 = vpop.f32.mrf.mxu0
        %v1609 = vadd.f32 %v1532, %v1608
        %v1610 = vand.u32 %v1012, 4294901760
        %1611 = vmatmul.f32.gmra.mxu0 %v1610
        %v1612 = vpop.f32.mrf.mxu0
        %v1613 = vadd.f32 %v1536, %v1612
        %v1614 = vand.u32 %v1015, 4294901760
        %1615 = vmatmul.f32.gmra.mxu0 %v1614
        %v1616 = vpop.f32.mrf.mxu0
        %v1617 = vadd.f32 %v1540, %v1616
        %v1618 = vand.u32 %v1018, 4294901760
        %1619 = vmatmul.f32.gmra.mxu0 %v1618
        %v1620 = vpop.f32.mrf.mxu0
        %v1621 = vadd.f32 %v1544, %v1620
        %v1622 = vand.u32 %v1021, 4294901760
        %1623 = vmatmul.f32.gmra.mxu0 %v1622
        %v1624 = vpop.f32.mrf.mxu0
        %v1625 = vadd.f32 %v1548, %v1624
        %v1626 = vand.u32 %v1024, 4294901760
        %1627 = vmatmul.f32.gmra.mxu0 %v1626
        %v1628 = vpop.f32.mrf.mxu0
        %v1629 = vadd.f32 %v1552, %v1628
        %v1630 = vand.u32 %v1027, 4294901760
        %1631 = vmatmul.f32.gmra.mxu0 %v1630
        %v1632 = vpop.f32.mrf.mxu0
        %v1633 = vadd.f32 %v1556, %v1632
        %v1634 = vand.u32 %v1030, 4294901760
        %1635 = vmatmul.f32.gmra.mxu0 %v1634
        %v1636 = vpop.f32.mrf.mxu0
        %v1637 = vadd.f32 %v1560, %v1636
        %v1638 = vand.u32 %v1033, 4294901760
        %1639 = vmatmul.f32.gmra.mxu0 %v1638
        %v1640 = vpop.f32.mrf.mxu0
        %v1641 = vadd.f32 %v1564, %v1640
        %v1642 = vand.u32 %v1036, 4294901760
        %1643 = vmatmul.f32.gmra.mxu0 %v1642
        %v1644 = vpop.f32.mrf.mxu0
        %v1645 = vadd.f32 %v1568, %v1644
        %1646 = vdwg.mxu0
        %v1647 = vld [vmem:[%s5] sm:$0xff]
        %v1648 = vld [vmem:[%s5 + $0x8] sm:$0xff]
        %v1649 = vld [vmem:[%s5 + $0x10] sm:$0xff]
        %v1650 = vld [vmem:[%s5 + $0x18] sm:$0xff]
        %v1651 = vld [vmem:[%s5 + $0x20] sm:$0xff]
        %v1652 = vld [vmem:[%s5 + $0x28] sm:$0xff]
        %v1653 = vld [vmem:[%s5 + $0x30] sm:$0xff]
        %v1654 = vld [vmem:[%s5 + $0x38] sm:$0xff]
        %v1655 = vld [vmem:[%s6] sm:$0x1]
        %v1657 = vperm.slane %v1655, 0
        %1659 = vmatpush.msra.mxu0 0.0
        %1660 = vmatpush.msra.mxu0 0.0
        %1661 = vmatpush.msra.mxu0 0.0
        %1662 = vmatpush.msra.mxu0 0.0
        %1663 = vmatpush.msra.mxu0 0.0
        %1664 = vmatpush.msra.mxu0 0.0
        %1665 = vmatpush.msra.mxu0 0.0
        %1666 = vmatpush.msra.mxu0 0.0
        %v1667 = vand.u32 %v1654, 4294901760
        %1668 = vmatpush.msra.mxu0 %v1667
        %v1669 = vand.u32 %v1653, 4294901760
        %1670 = vmatpush.msra.mxu0 %v1669
        %v1671 = vand.u32 %v1652, 4294901760
        %1672 = vmatpush.msra.mxu0 %v1671
        %v1673 = vand.u32 %v1651, 4294901760
        %1674 = vmatpush.msra.mxu0 %v1673
        %v1675 = vand.u32 %v1650, 4294901760
        %1676 = vmatpush.msra.mxu0 %v1675
        %v1677 = vand.u32 %v1649, 4294901760
        %1678 = vmatpush.msra.mxu0 %v1677
        %v1679 = vand.u32 %v1648, 4294901760
        %1680 = vmatpush.msra.mxu0 %v1679
        %v1681 = vand.u32 %v1647, 4294901760
        %1682 = vmatpush.msra.mxu0 %v1681
        %v1683 = vand.u32 %v1000, 4294901760
        %v1684 = vsub.f32 %v1000, %v1683
        %v1685 = vand.u32 %v1684, 4294901760
        %v1686 = vsub.f32 %v1684, %v1685
        %v1687 = vand.u32 %v1686, 4294901760
        %1688 = vmatmul.f32.gmra.mxu0 %v1687
        %v1689 = vpop.f32.mrf.mxu0
        %v1690 = vadd.f32 %v1657, %v1689
        %v1691 = vand.u32 %v1003, 4294901760
        %v1692 = vsub.f32 %v1003, %v1691
        %v1693 = vand.u32 %v1692, 4294901760
        %v1694 = vsub.f32 %v1692, %v1693
        %v1695 = vand.u32 %v1694, 4294901760
        %1696 = vmatmul.f32.gmra.mxu0 %v1695
        %v1697 = vpop.f32.mrf.mxu0
        %v1698 = vadd.f32 %v1657, %v1697
        %v1699 = vand.u32 %v1006, 4294901760
        %v1700 = vsub.f32 %v1006, %v1699
        %v1701 = vand.u32 %v1700, 4294901760
        %v1702 = vsub.f32 %v1700, %v1701
        %v1703 = vand.u32 %v1702, 4294901760
        %1704 = vmatmul.f32.gmra.mxu0 %v1703
        %v1705 = vpop.f32.mrf.mxu0
        %v1706 = vadd.f32 %v1657, %v1705
        %v1707 = vand.u32 %v1009, 4294901760
        %v1708 = vsub.f32 %v1009, %v1707
        %v1709 = vand.u32 %v1708, 4294901760
        %v1710 = vsub.f32 %v1708, %v1709
        %v1711 = vand.u32 %v1710, 4294901760
        %1712 = vmatmul.f32.gmra.mxu0 %v1711
        %v1713 = vpop.f32.mrf.mxu0
        %v1714 = vadd.f32 %v1657, %v1713
        %v1715 = vand.u32 %v1012, 4294901760
        %v1716 = vsub.f32 %v1012, %v1715
        %v1717 = vand.u32 %v1716, 4294901760
        %v1718 = vsub.f32 %v1716, %v1717
        %v1719 = vand.u32 %v1718, 4294901760
        %1720 = vmatmul.f32.gmra.mxu0 %v1719
        %v1721 = vpop.f32.mrf.mxu0
        %v1722 = vadd.f32 %v1657, %v1721
        %v1723 = vand.u32 %v1015, 4294901760
        %v1724 = vsub.f32 %v1015, %v1723
        %v1725 = vand.u32 %v1724, 4294901760
        %v1726 = vsub.f32 %v1724, %v1725
        %v1727 = vand.u32 %v1726, 4294901760
        %1728 = vmatmul.f32.gmra.mxu0 %v1727
        %v1729 = vpop.f32.mrf.mxu0
        %v1730 = vadd.f32 %v1657, %v1729
        %v1731 = vand.u32 %v1018, 4294901760
        %v1732 = vsub.f32 %v1018, %v1731
        %v1733 = vand.u32 %v1732, 4294901760
        %v1734 = vsub.f32 %v1732, %v1733
        %v1735 = vand.u32 %v1734, 4294901760
        %1736 = vmatmul.f32.gmra.mxu0 %v1735
        %v1737 = vpop.f32.mrf.mxu0
        %v1738 = vadd.f32 %v1657, %v1737
        %v1739 = vand.u32 %v1021, 4294901760
        %v1740 = vsub.f32 %v1021, %v1739
        %v1741 = vand.u32 %v1740, 4294901760
        %v1742 = vsub.f32 %v1740, %v1741
        %v1743 = vand.u32 %v1742, 4294901760
        %1744 = vmatmul.f32.gmra.mxu0 %v1743
        %v1745 = vpop.f32.mrf.mxu0
        %v1746 = vadd.f32 %v1657, %v1745
        %v1747 = vand.u32 %v1024, 4294901760
        %v1748 = vsub.f32 %v1024, %v1747
        %v1749 = vand.u32 %v1748, 4294901760
        %v1750 = vsub.f32 %v1748, %v1749
        %v1751 = vand.u32 %v1750, 4294901760
        %1752 = vmatmul.f32.gmra.mxu0 %v1751
        %v1753 = vpop.f32.mrf.mxu0
        %v1754 = vadd.f32 %v1657, %v1753
        %v1755 = vand.u32 %v1027, 4294901760
        %v1756 = vsub.f32 %v1027, %v1755
        %v1757 = vand.u32 %v1756, 4294901760
        %v1758 = vsub.f32 %v1756, %v1757
        %v1759 = vand.u32 %v1758, 4294901760
        %1760 = vmatmul.f32.gmra.mxu0 %v1759
        %v1761 = vpop.f32.mrf.mxu0
        %v1762 = vadd.f32 %v1657, %v1761
        %v1763 = vand.u32 %v1030, 4294901760
        %v1764 = vsub.f32 %v1030, %v1763
        %v1765 = vand.u32 %v1764, 4294901760
        %v1766 = vsub.f32 %v1764, %v1765
        %v1767 = vand.u32 %v1766, 4294901760
        %1768 = vmatmul.f32.gmra.mxu0 %v1767
        %v1769 = vpop.f32.mrf.mxu0
        %v1770 = vadd.f32 %v1657, %v1769
        %v1771 = vand.u32 %v1033, 4294901760
        %v1772 = vsub.f32 %v1033, %v1771
        %v1773 = vand.u32 %v1772, 4294901760
        %v1774 = vsub.f32 %v1772, %v1773
        %v1775 = vand.u32 %v1774, 4294901760
        %1776 = vmatmul.f32.gmra.mxu0 %v1775
        %v1777 = vpop.f32.mrf.mxu0
        %v1778 = vadd.f32 %v1657, %v1777
        %v1779 = vand.u32 %v1036, 4294901760
        %v1780 = vsub.f32 %v1036, %v1779
        %v1781 = vand.u32 %v1780, 4294901760
        %v1782 = vsub.f32 %v1780, %v1781
        %v1783 = vand.u32 %v1782, 4294901760
        %1784 = vmatmul.f32.gmra.mxu0 %v1783
        %v1785 = vpop.f32.mrf.mxu0
        %v1786 = vadd.f32 %v1657, %v1785
        %1787 = vdwg.mxu0
        %1788 = vmatpush.msra.mxu0 0.0
        %1789 = vmatpush.msra.mxu0 0.0
        %1790 = vmatpush.msra.mxu0 0.0
        %1791 = vmatpush.msra.mxu0 0.0
        %1792 = vmatpush.msra.mxu0 0.0
        %1793 = vmatpush.msra.mxu0 0.0
        %1794 = vmatpush.msra.mxu0 0.0
        %1795 = vmatpush.msra.mxu0 0.0
        %v1796 = vand.u32 %v1654, 4294901760
        %v1797 = vsub.f32 %v1654, %v1796
        %v1798 = vand.u32 %v1797, 4294901760
        %v1799 = vsub.f32 %v1797, %v1798
        %v1800 = vand.u32 %v1799, 4294901760
        %1801 = vmatpush.msra.mxu0 %v1800
        %v1802 = vand.u32 %v1653, 4294901760
        %v1803 = vsub.f32 %v1653, %v1802
        %v1804 = vand.u32 %v1803, 4294901760
        %v1805 = vsub.f32 %v1803, %v1804
        %v1806 = vand.u32 %v1805, 4294901760
        %1807 = vmatpush.msra.mxu0 %v1806
        %v1808 = vand.u32 %v1652, 4294901760
        %v1809 = vsub.f32 %v1652, %v1808
        %v1810 = vand.u32 %v1809, 4294901760
        %v1811 = vsub.f32 %v1809, %v1810
        %v1812 = vand.u32 %v1811, 4294901760
        %1813 = vmatpush.msra.mxu0 %v1812
        %v1814 = vand.u32 %v1651, 4294901760
        %v1815 = vsub.f32 %v1651, %v1814
        %v1816 = vand.u32 %v1815, 4294901760
        %v1817 = vsub.f32 %v1815, %v1816
        %v1818 = vand.u32 %v1817, 4294901760
        %1819 = vmatpush.msra.mxu0 %v1818
        %v1820 = vand.u32 %v1650, 4294901760
        %v1821 = vsub.f32 %v1650, %v1820
        %v1822 = vand.u32 %v1821, 4294901760
        %v1823 = vsub.f32 %v1821, %v1822
        %v1824 = vand.u32 %v1823, 4294901760
        %1825 = vmatpush.msra.mxu0 %v1824
        %v1826 = vand.u32 %v1649, 4294901760
        %v1827 = vsub.f32 %v1649, %v1826
        %v1828 = vand.u32 %v1827, 4294901760
        %v1829 = vsub.f32 %v1827, %v1828
        %v1830 = vand.u32 %v1829, 4294901760
        %1831 = vmatpush.msra.mxu0 %v1830
        %v1832 = vand.u32 %v1648, 4294901760
        %v1833 = vsub.f32 %v1648, %v1832
        %v1834 = vand.u32 %v1833, 4294901760
        %v1835 = vsub.f32 %v1833, %v1834
        %v1836 = vand.u32 %v1835, 4294901760
        %1837 = vmatpush.msra.mxu0 %v1836
        %v1838 = vand.u32 %v1647, 4294901760
        %v1839 = vsub.f32 %v1647, %v1838
        %v1840 = vand.u32 %v1839, 4294901760
        %v1841 = vsub.f32 %v1839, %v1840
        %v1842 = vand.u32 %v1841, 4294901760
        %1843 = vmatpush.msra.mxu0 %v1842
        %v1844 = vand.u32 %v1000, 4294901760
        %1845 = vmatmul.f32.gmra.mxu0 %v1844
        %v1846 = vpop.f32.mrf.mxu0
        %v1847 = vadd.f32 %v1690, %v1846
        %v1848 = vand.u32 %v1003, 4294901760
        %1849 = vmatmul.f32.gmra.mxu0 %v1848
        %v1850 = vpop.f32.mrf.mxu0
        %v1851 = vadd.f32 %v1698, %v1850
        %v1852 = vand.u32 %v1006, 4294901760
        %1853 = vmatmul.f32.gmra.mxu0 %v1852
        %v1854 = vpop.f32.mrf.mxu0
        %v1855 = vadd.f32 %v1706, %v1854
        %v1856 = vand.u32 %v1009, 4294901760
        %1857 = vmatmul.f32.gmra.mxu0 %v1856
        %v1858 = vpop.f32.mrf.mxu0
        %v1859 = vadd.f32 %v1714, %v1858
        %v1860 = vand.u32 %v1012, 4294901760
        %1861 = vmatmul.f32.gmra.mxu0 %v1860
        %v1862 = vpop.f32.mrf.mxu0
        %v1863 = vadd.f32 %v1722, %v1862
        %v1864 = vand.u32 %v1015, 4294901760
        %1865 = vmatmul.f32.gmra.mxu0 %v1864
        %v1866 = vpop.f32.mrf.mxu0
        %v1867 = vadd.f32 %v1730, %v1866
        %v1868 = vand.u32 %v1018, 4294901760
        %1869 = vmatmul.f32.gmra.mxu0 %v1868
        %v1870 = vpop.f32.mrf.mxu0
        %v1871 = vadd.f32 %v1738, %v1870
        %v1872 = vand.u32 %v1021, 4294901760
        %1873 = vmatmul.f32.gmra.mxu0 %v1872
        %v1874 = vpop.f32.mrf.mxu0
        %v1875 = vadd.f32 %v1746, %v1874
        %v1876 = vand.u32 %v1024, 4294901760
        %1877 = vmatmul.f32.gmra.mxu0 %v1876
        %v1878 = vpop.f32.mrf.mxu0
        %v1879 = vadd.f32 %v1754, %v1878
        %v1880 = vand.u32 %v1027, 4294901760
        %1881 = vmatmul.f32.gmra.mxu0 %v1880
        %v1882 = vpop.f32.mrf.mxu0
        %v1883 = vadd.f32 %v1762, %v1882
        %v1884 = vand.u32 %v1030, 4294901760
        %1885 = vmatmul.f32.gmra.mxu0 %v1884
        %v1886 = vpop.f32.mrf.mxu0
        %v1887 = vadd.f32 %v1770, %v1886
        %v1888 = vand.u32 %v1033, 4294901760
        %1889 = vmatmul.f32.gmra.mxu0 %v1888
        %v1890 = vpop.f32.mrf.mxu0
        %v1891 = vadd.f32 %v1778, %v1890
        %v1892 = vand.u32 %v1036, 4294901760
        %1893 = vmatmul.f32.gmra.mxu0 %v1892
        %v1894 = vpop.f32.mrf.mxu0
        %v1895 = vadd.f32 %v1786, %v1894
        %1896 = vdwg.mxu0
        %1897 = vmatpush.msra.mxu0 0.0
        %1898 = vmatpush.msra.mxu0 0.0
        %1899 = vmatpush.msra.mxu0 0.0
        %1900 = vmatpush.msra.mxu0 0.0
        %1901 = vmatpush.msra.mxu0 0.0
        %1902 = vmatpush.msra.mxu0 0.0
        %1903 = vmatpush.msra.mxu0 0.0
        %1904 = vmatpush.msra.mxu0 0.0
        %v1905 = vand.u32 %v1654, 4294901760
        %v1906 = vsub.f32 %v1654, %v1905
        %1907 = vmatpush.msra.mxu0 %v1906
        %v1908 = vand.u32 %v1653, 4294901760
        %v1909 = vsub.f32 %v1653, %v1908
        %1910 = vmatpush.msra.mxu0 %v1909
        %v1911 = vand.u32 %v1652, 4294901760
        %v1912 = vsub.f32 %v1652, %v1911
        %1913 = vmatpush.msra.mxu0 %v1912
        %v1914 = vand.u32 %v1651, 4294901760
        %v1915 = vsub.f32 %v1651, %v1914
        %1916 = vmatpush.msra.mxu0 %v1915
        %v1917 = vand.u32 %v1650, 4294901760
        %v1918 = vsub.f32 %v1650, %v1917
        %1919 = vmatpush.msra.mxu0 %v1918
        %v1920 = vand.u32 %v1649, 4294901760
        %v1921 = vsub.f32 %v1649, %v1920
        %1922 = vmatpush.msra.mxu0 %v1921
        %v1923 = vand.u32 %v1648, 4294901760
        %v1924 = vsub.f32 %v1648, %v1923
        %1925 = vmatpush.msra.mxu0 %v1924
        %v1926 = vand.u32 %v1647, 4294901760
        %v1927 = vsub.f32 %v1647, %v1926
        %1928 = vmatpush.msra.mxu0 %v1927
        %v1929 = vand.u32 %v1000, 4294901760
        %v1930 = vsub.f32 %v1000, %v1929
        %1931 = vmatmul.f32.gmra.mxu0 %v1930
        %v1932 = vpop.f32.mrf.mxu0
        %v1933 = vadd.f32 %v1847, %v1932
        %v1934 = vand.u32 %v1003, 4294901760
        %v1935 = vsub.f32 %v1003, %v1934
        %1936 = vmatmul.f32.gmra.mxu0 %v1935
        %v1937 = vpop.f32.mrf.mxu0
        %v1938 = vadd.f32 %v1851, %v1937
        %v1939 = vand.u32 %v1006, 4294901760
        %v1940 = vsub.f32 %v1006, %v1939
        %1941 = vmatmul.f32.gmra.mxu0 %v1940
        %v1942 = vpop.f32.mrf.mxu0
        %v1943 = vadd.f32 %v1855, %v1942
        %v1944 = vand.u32 %v1009, 4294901760
        %v1945 = vsub.f32 %v1009, %v1944
        %1946 = vmatmul.f32.gmra.mxu0 %v1945
        %v1947 = vpop.f32.mrf.mxu0
        %v1948 = vadd.f32 %v1859, %v1947
        %v1949 = vand.u32 %v1012, 4294901760
        %v1950 = vsub.f32 %v1012, %v1949
        %1951 = vmatmul.f32.gmra.mxu0 %v1950
        %v1952 = vpop.f32.mrf.mxu0
        %v1953 = vadd.f32 %v1863, %v1952
        %v1954 = vand.u32 %v1015, 4294901760
        %v1955 = vsub.f32 %v1015, %v1954
        %1956 = vmatmul.f32.gmra.mxu0 %v1955
        %v1957 = vpop.f32.mrf.mxu0
        %v1958 = vadd.f32 %v1867, %v1957
        %v1959 = vand.u32 %v1018, 4294901760
        %v1960 = vsub.f32 %v1018, %v1959
        %1961 = vmatmul.f32.gmra.mxu0 %v1960
        %v1962 = vpop.f32.mrf.mxu0
        %v1963 = vadd.f32 %v1871, %v1962
        %v1964 = vand.u32 %v1021, 4294901760
        %v1965 = vsub.f32 %v1021, %v1964
        %1966 = vmatmul.f32.gmra.mxu0 %v1965
        %v1967 = vpop.f32.mrf.mxu0
        %v1968 = vadd.f32 %v1875, %v1967
        %v1969 = vand.u32 %v1024, 4294901760
        %v1970 = vsub.f32 %v1024, %v1969
        %1971 = vmatmul.f32.gmra.mxu0 %v1970
        %v1972 = vpop.f32.mrf.mxu0
        %v1973 = vadd.f32 %v1879, %v1972
        %v1974 = vand.u32 %v1027, 4294901760
        %v1975 = vsub.f32 %v1027, %v1974
        %1976 = vmatmul.f32.gmra.mxu0 %v1975
        %v1977 = vpop.f32.mrf.mxu0
        %v1978 = vadd.f32 %v1883, %v1977
        %v1979 = vand.u32 %v1030, 4294901760
        %v1980 = vsub.f32 %v1030, %v1979
        %1981 = vmatmul.f32.gmra.mxu0 %v1980
        %v1982 = vpop.f32.mrf.mxu0
        %v1983 = vadd.f32 %v1887, %v1982
        %v1984 = vand.u32 %v1033, 4294901760
        %v1985 = vsub.f32 %v1033, %v1984
        %1986 = vmatmul.f32.gmra.mxu0 %v1985
        %v1987 = vpop.f32.mrf.mxu0
        %v1988 = vadd.f32 %v1891, %v1987
        %v1989 = vand.u32 %v1036, 4294901760
        %v1990 = vsub.f32 %v1036, %v1989
        %1991 = vmatmul.f32.gmra.mxu0 %v1990
        %v1992 = vpop.f32.mrf.mxu0
        %v1993 = vadd.f32 %v1895, %v1992
        %1994 = vdwg.mxu0
        %1995 = vmatpush.msra.mxu0 0.0
        %1996 = vmatpush.msra.mxu0 0.0
        %1997 = vmatpush.msra.mxu0 0.0
        %1998 = vmatpush.msra.mxu0 0.0
        %1999 = vmatpush.msra.mxu0 0.0
        %2000 = vmatpush.msra.mxu0 0.0
        %2001 = vmatpush.msra.mxu0 0.0
        %2002 = vmatpush.msra.mxu0 0.0
        %v2003 = vand.u32 %v1654, 4294901760
        %2004 = vmatpush.msra.mxu0 %v2003
        %v2005 = vand.u32 %v1653, 4294901760
        %2006 = vmatpush.msra.mxu0 %v2005
        %v2007 = vand.u32 %v1652, 4294901760
        %2008 = vmatpush.msra.mxu0 %v2007
        %v2009 = vand.u32 %v1651, 4294901760
        %2010 = vmatpush.msra.mxu0 %v2009
        %v2011 = vand.u32 %v1650, 4294901760
        %2012 = vmatpush.msra.mxu0 %v2011
        %v2013 = vand.u32 %v1649, 4294901760
        %2014 = vmatpush.msra.mxu0 %v2013
        %v2015 = vand.u32 %v1648, 4294901760
        %2016 = vmatpush.msra.mxu0 %v2015
        %v2017 = vand.u32 %v1647, 4294901760
        %2018 = vmatpush.msra.mxu0 %v2017
        %v2019 = vand.u32 %v1000, 4294901760
        %v2020 = vsub.f32 %v1000, %v2019
        %v2021 = vand.u32 %v2020, 4294901760
        %2022 = vmatmul.f32.gmra.mxu0 %v2021
        %v2023 = vpop.f32.mrf.mxu0
        %v2024 = vadd.f32 %v1933, %v2023
        %v2025 = vand.u32 %v1003, 4294901760
        %v2026 = vsub.f32 %v1003, %v2025
        %v2027 = vand.u32 %v2026, 4294901760
        %2028 = vmatmul.f32.gmra.mxu0 %v2027
        %v2029 = vpop.f32.mrf.mxu0
        %v2030 = vadd.f32 %v1938, %v2029
        %v2031 = vand.u32 %v1006, 4294901760
        %v2032 = vsub.f32 %v1006, %v2031
        %v2033 = vand.u32 %v2032, 4294901760
        %2034 = vmatmul.f32.gmra.mxu0 %v2033
        %v2035 = vpop.f32.mrf.mxu0
        %v2036 = vadd.f32 %v1943, %v2035
        %v2037 = vand.u32 %v1009, 4294901760
        %v2038 = vsub.f32 %v1009, %v2037
        %v2039 = vand.u32 %v2038, 4294901760
        %2040 = vmatmul.f32.gmra.mxu0 %v2039
        %v2041 = vpop.f32.mrf.mxu0
        %v2042 = vadd.f32 %v1948, %v2041
        %v2043 = vand.u32 %v1012, 4294901760
        %v2044 = vsub.f32 %v1012, %v2043
        %v2045 = vand.u32 %v2044, 4294901760
        %2046 = vmatmul.f32.gmra.mxu0 %v2045
        %v2047 = vpop.f32.mrf.mxu0
        %v2048 = vadd.f32 %v1953, %v2047
        %v2049 = vand.u32 %v1015, 4294901760
        %v2050 = vsub.f32 %v1015, %v2049
        %v2051 = vand.u32 %v2050, 4294901760
        %2052 = vmatmul.f32.gmra.mxu0 %v2051
        %v2053 = vpop.f32.mrf.mxu0
        %v2054 = vadd.f32 %v1958, %v2053
        %v2055 = vand.u32 %v1018, 4294901760
        %v2056 = vsub.f32 %v1018, %v2055
        %v2057 = vand.u32 %v2056, 4294901760
        %2058 = vmatmul.f32.gmra.mxu0 %v2057
        %v2059 = vpop.f32.mrf.mxu0
        %v2060 = vadd.f32 %v1963, %v2059
        %v2061 = vand.u32 %v1021, 4294901760
        %v2062 = vsub.f32 %v1021, %v2061
        %v2063 = vand.u32 %v2062, 4294901760
        %2064 = vmatmul.f32.gmra.mxu0 %v2063
        %v2065 = vpop.f32.mrf.mxu0
        %v2066 = vadd.f32 %v1968, %v2065
        %v2067 = vand.u32 %v1024, 4294901760
        %v2068 = vsub.f32 %v1024, %v2067
        %v2069 = vand.u32 %v2068, 4294901760
        %2070 = vmatmul.f32.gmra.mxu0 %v2069
        %v2071 = vpop.f32.mrf.mxu0
        %v2072 = vadd.f32 %v1973, %v2071
        %v2073 = vand.u32 %v1027, 4294901760
        %v2074 = vsub.f32 %v1027, %v2073
        %v2075 = vand.u32 %v2074, 4294901760
        %2076 = vmatmul.f32.gmra.mxu0 %v2075
        %v2077 = vpop.f32.mrf.mxu0
        %v2078 = vadd.f32 %v1978, %v2077
        %v2079 = vand.u32 %v1030, 4294901760
        %v2080 = vsub.f32 %v1030, %v2079
        %v2081 = vand.u32 %v2080, 4294901760
        %2082 = vmatmul.f32.gmra.mxu0 %v2081
        %v2083 = vpop.f32.mrf.mxu0
        %v2084 = vadd.f32 %v1983, %v2083
        %v2085 = vand.u32 %v1033, 4294901760
        %v2086 = vsub.f32 %v1033, %v2085
        %v2087 = vand.u32 %v2086, 4294901760
        %2088 = vmatmul.f32.gmra.mxu0 %v2087
        %v2089 = vpop.f32.mrf.mxu0
        %v2090 = vadd.f32 %v1988, %v2089
        %v2091 = vand.u32 %v1036, 4294901760
        %v2092 = vsub.f32 %v1036, %v2091
        %v2093 = vand.u32 %v2092, 4294901760
        %2094 = vmatmul.f32.gmra.mxu0 %v2093
        %v2095 = vpop.f32.mrf.mxu0
        %v2096 = vadd.f32 %v1993, %v2095
        %2097 = vdwg.mxu0
        %2098 = vmatpush.msra.mxu0 0.0
        %2099 = vmatpush.msra.mxu0 0.0
        %2100 = vmatpush.msra.mxu0 0.0
        %2101 = vmatpush.msra.mxu0 0.0
        %2102 = vmatpush.msra.mxu0 0.0
        %2103 = vmatpush.msra.mxu0 0.0
        %2104 = vmatpush.msra.mxu0 0.0
        %2105 = vmatpush.msra.mxu0 0.0
        %v2106 = vand.u32 %v1654, 4294901760
        %v2107 = vsub.f32 %v1654, %v2106
        %v2108 = vand.u32 %v2107, 4294901760
        %2109 = vmatpush.msra.mxu0 %v2108
        %v2110 = vand.u32 %v1653, 4294901760
        %v2111 = vsub.f32 %v1653, %v2110
        %v2112 = vand.u32 %v2111, 4294901760
        %2113 = vmatpush.msra.mxu0 %v2112
        %v2114 = vand.u32 %v1652, 4294901760
        %v2115 = vsub.f32 %v1652, %v2114
        %v2116 = vand.u32 %v2115, 4294901760
        %2117 = vmatpush.msra.mxu0 %v2116
        %v2118 = vand.u32 %v1651, 4294901760
        %v2119 = vsub.f32 %v1651, %v2118
        %v2120 = vand.u32 %v2119, 4294901760
        %2121 = vmatpush.msra.mxu0 %v2120
        %v2122 = vand.u32 %v1650, 4294901760
        %v2123 = vsub.f32 %v1650, %v2122
        %v2124 = vand.u32 %v2123, 4294901760
        %2125 = vmatpush.msra.mxu0 %v2124
        %v2126 = vand.u32 %v1649, 4294901760
        %v2127 = vsub.f32 %v1649, %v2126
        %v2128 = vand.u32 %v2127, 4294901760
        %2129 = vmatpush.msra.mxu0 %v2128
        %v2130 = vand.u32 %v1648, 4294901760
        %v2131 = vsub.f32 %v1648, %v2130
        %v2132 = vand.u32 %v2131, 4294901760
        %2133 = vmatpush.msra.mxu0 %v2132
        %v2134 = vand.u32 %v1647, 4294901760
        %v2135 = vsub.f32 %v1647, %v2134
        %v2136 = vand.u32 %v2135, 4294901760
        %2137 = vmatpush.msra.mxu0 %v2136
        %v2138 = vand.u32 %v1000, 4294901760
        %2139 = vmatmul.f32.gmra.mxu0 %v2138
        %v2140 = vpop.f32.mrf.mxu0
        %v2141 = vadd.f32 %v2024, %v2140
        %v2142 = vand.u32 %v1003, 4294901760
        %2143 = vmatmul.f32.gmra.mxu0 %v2142
        %v2144 = vpop.f32.mrf.mxu0
        %v2145 = vadd.f32 %v2030, %v2144
        %v2146 = vand.u32 %v1006, 4294901760
        %2147 = vmatmul.f32.gmra.mxu0 %v2146
        %v2148 = vpop.f32.mrf.mxu0
        %v2149 = vadd.f32 %v2036, %v2148
        %v2150 = vand.u32 %v1009, 4294901760
        %2151 = vmatmul.f32.gmra.mxu0 %v2150
        %v2152 = vpop.f32.mrf.mxu0
        %v2153 = vadd.f32 %v2042, %v2152
        %v2154 = vand.u32 %v1012, 4294901760
        %2155 = vmatmul.f32.gmra.mxu0 %v2154
        %v2156 = vpop.f32.mrf.mxu0
        %v2157 = vadd.f32 %v2048, %v2156
        %v2158 = vand.u32 %v1015, 4294901760
        %2159 = vmatmul.f32.gmra.mxu0 %v2158
        %v2160 = vpop.f32.mrf.mxu0
        %v2161 = vadd.f32 %v2054, %v2160
        %v2162 = vand.u32 %v1018, 4294901760
        %2163 = vmatmul.f32.gmra.mxu0 %v2162
        %v2164 = vpop.f32.mrf.mxu0
        %v2165 = vadd.f32 %v2060, %v2164
        %v2166 = vand.u32 %v1021, 4294901760
        %2167 = vmatmul.f32.gmra.mxu0 %v2166
        %v2168 = vpop.f32.mrf.mxu0
        %v2169 = vadd.f32 %v2066, %v2168
        %v2170 = vand.u32 %v1024, 4294901760
        %2171 = vmatmul.f32.gmra.mxu0 %v2170
        %v2172 = vpop.f32.mrf.mxu0
        %v2173 = vadd.f32 %v2072, %v2172
        %v2174 = vand.u32 %v1027, 4294901760
        %2175 = vmatmul.f32.gmra.mxu0 %v2174
        %v2176 = vpop.f32.mrf.mxu0
        %v2177 = vadd.f32 %v2078, %v2176
        %v2178 = vand.u32 %v1030, 4294901760
        %2179 = vmatmul.f32.gmra.mxu0 %v2178
        %v2180 = vpop.f32.mrf.mxu0
        %v2181 = vadd.f32 %v2084, %v2180
        %v2182 = vand.u32 %v1033, 4294901760
        %2183 = vmatmul.f32.gmra.mxu0 %v2182
        %v2184 = vpop.f32.mrf.mxu0
        %v2185 = vadd.f32 %v2090, %v2184
        %v2186 = vand.u32 %v1036, 4294901760
        %2187 = vmatmul.f32.gmra.mxu0 %v2186
        %v2188 = vpop.f32.mrf.mxu0
        %v2189 = vadd.f32 %v2096, %v2188
        %2190 = vdwg.mxu0
        %2191 = vmatpush.msra.mxu0 0.0
        %2192 = vmatpush.msra.mxu0 0.0
        %2193 = vmatpush.msra.mxu0 0.0
        %2194 = vmatpush.msra.mxu0 0.0
        %2195 = vmatpush.msra.mxu0 0.0
        %2196 = vmatpush.msra.mxu0 0.0
        %2197 = vmatpush.msra.mxu0 0.0
        %2198 = vmatpush.msra.mxu0 0.0
        %v2199 = vand.u32 %v1654, 4294901760
        %2200 = vmatpush.msra.mxu0 %v2199
        %v2201 = vand.u32 %v1653, 4294901760
        %2202 = vmatpush.msra.mxu0 %v2201
        %v2203 = vand.u32 %v1652, 4294901760
        %2204 = vmatpush.msra.mxu0 %v2203
        %v2205 = vand.u32 %v1651, 4294901760
        %2206 = vmatpush.msra.mxu0 %v2205
        %v2207 = vand.u32 %v1650, 4294901760
        %2208 = vmatpush.msra.mxu0 %v2207
        %v2209 = vand.u32 %v1649, 4294901760
        %2210 = vmatpush.msra.mxu0 %v2209
        %v2211 = vand.u32 %v1648, 4294901760
        %2212 = vmatpush.msra.mxu0 %v2211
        %v2213 = vand.u32 %v1647, 4294901760
        %2214 = vmatpush.msra.mxu0 %v2213
        %v2215 = vand.u32 %v1000, 4294901760
        %2216 = vmatmul.f32.gmra.mxu0 %v2215
        %v2217 = vpop.f32.mrf.mxu0
        %v2218 = vadd.f32 %v2141, %v2217
        %v2219 = vand.u32 %v1003, 4294901760
        %2220 = vmatmul.f32.gmra.mxu0 %v2219
        %v2221 = vpop.f32.mrf.mxu0
        %v2222 = vadd.f32 %v2145, %v2221
        %v2223 = vand.u32 %v1006, 4294901760
        %2224 = vmatmul.f32.gmra.mxu0 %v2223
        %v2225 = vpop.f32.mrf.mxu0
        %v2226 = vadd.f32 %v2149, %v2225
        %v2227 = vand.u32 %v1009, 4294901760
        %2228 = vmatmul.f32.gmra.mxu0 %v2227
        %v2229 = vpop.f32.mrf.mxu0
        %v2230 = vadd.f32 %v2153, %v2229
        %v2231 = vand.u32 %v1012, 4294901760
        %2232 = vmatmul.f32.gmra.mxu0 %v2231
        %v2233 = vpop.f32.mrf.mxu0
        %v2234 = vadd.f32 %v2157, %v2233
        %v2235 = vand.u32 %v1015, 4294901760
        %2236 = vmatmul.f32.gmra.mxu0 %v2235
        %v2237 = vpop.f32.mrf.mxu0
        %v2238 = vadd.f32 %v2161, %v2237
        %v2239 = vand.u32 %v1018, 4294901760
        %2240 = vmatmul.f32.gmra.mxu0 %v2239
        %v2241 = vpop.f32.mrf.mxu0
        %v2242 = vadd.f32 %v2165, %v2241
        %v2243 = vand.u32 %v1021, 4294901760
        %2244 = vmatmul.f32.gmra.mxu0 %v2243
        %v2245 = vpop.f32.mrf.mxu0
        %v2246 = vadd.f32 %v2169, %v2245
        %v2247 = vand.u32 %v1024, 4294901760
        %2248 = vmatmul.f32.gmra.mxu0 %v2247
        %v2249 = vpop.f32.mrf.mxu0
        %v2250 = vadd.f32 %v2173, %v2249
        %v2251 = vand.u32 %v1027, 4294901760
        %2252 = vmatmul.f32.gmra.mxu0 %v2251
        %v2253 = vpop.f32.mrf.mxu0
        %v2254 = vadd.f32 %v2177, %v2253
        %v2255 = vand.u32 %v1030, 4294901760
        %2256 = vmatmul.f32.gmra.mxu0 %v2255
        %v2257 = vpop.f32.mrf.mxu0
        %v2258 = vadd.f32 %v2181, %v2257
        %v2259 = vand.u32 %v1033, 4294901760
        %2260 = vmatmul.f32.gmra.mxu0 %v2259
        %v2261 = vpop.f32.mrf.mxu0
        %v2262 = vadd.f32 %v2185, %v2261
        %v2263 = vand.u32 %v1036, 4294901760
        %2264 = vmatmul.f32.gmra.mxu0 %v2263
        %v2265 = vpop.f32.mrf.mxu0
        %v2266 = vadd.f32 %v2189, %v2265
        %2267 = vdwg.mxu0
        %v2268 = vmul.f32 %v300, %v1597
        %v2269 = vmul.f32 %v301, %v1601
        %v2270 = vmul.f32 %v302, %v1605
        %v2271 = vmul.f32 %v303, %v1609
        %v2272 = vmul.f32 %v304, %v1613
        %v2273 = vmul.f32 %v305, %v1617
        %v2274 = vmul.f32 %v306, %v1621
        %v2275 = vmul.f32 %v307, %v1625
        %v2276 = vmul.f32 %v308, %v1629
        %v2277 = vmul.f32 %v309, %v1633
        %v2278 = vmul.f32 %v310, %v1637
        %v2279 = vmul.f32 %v311, %v1641
        %v2280 = vmul.f32 %v312, %v1645
        %v2281 = vadd.f32 %v2268, %v2218
        %v2282 = vadd.f32 %v2269, %v2222
        %v2283 = vadd.f32 %v2270, %v2226
        %v2284 = vadd.f32 %v2271, %v2230
        %v2285 = vadd.f32 %v2272, %v2234
        %v2286 = vadd.f32 %v2273, %v2238
        %v2287 = vadd.f32 %v2274, %v2242
        %v2288 = vadd.f32 %v2275, %v2246
        %v2289 = vadd.f32 %v2276, %v2250
        %v2290 = vadd.f32 %v2277, %v2254
        %v2291 = vadd.f32 %v2278, %v2258
        %v2292 = vadd.f32 %v2279, %v2262
        %v2293 = vadd.f32 %v2280, %v2266
        %2294 = vst.msk [vmem:[%s280] sm:$0xff] %vm325, %v2281
        %2295 = vst.msk [vmem:[%s280 + $0x8] sm:$0xff] %vm325, %v2282
        %2296 = vst.msk [vmem:[%s280 + $0x10] sm:$0xff] %vm325, %v2283
        %2297 = vst.msk [vmem:[%s280 + $0x18] sm:$0xff] %vm325, %v2284
        %2298 = vst.msk [vmem:[%s280 + $0x20] sm:$0xff] %vm325, %v2285
        %2299 = vst.msk [vmem:[%s280 + $0x28] sm:$0xff] %vm325, %v2286
        %2300 = vst.msk [vmem:[%s280 + $0x30] sm:$0xff] %vm325, %v2287
        %2301 = vst.msk [vmem:[%s280 + $0x38] sm:$0xff] %vm325, %v2288
        %2302 = vst.msk [vmem:[%s280 + $0x40] sm:$0xff] %vm325, %v2289
        %2303 = vst.msk [vmem:[%s280 + $0x48] sm:$0xff] %vm325, %v2290
        %2304 = vst.msk [vmem:[%s280 + $0x50] sm:$0xff] %vm325, %v2291
        %2305 = vst.msk [vmem:[%s280 + $0x58] sm:$0xff] %vm325, %v2292
        %2306 = vst.msk [vmem:[%s280 + $0x60] sm:$0xff] %vm325, %v2293
        %s2307 = sand.u32 %s178, 1
        %s2308 = sand.u32 %s178, 1
        %s2309 = smul.addr %s2308, 104
        %s2310 = scalar_lea.vmem [#allocation2], %s2309
        // Predicated region
        $region49: #{feat_transformer.1} parent=47 // pred_check
          %p2311 = pneg %p188
        $region50: #{feat_transformer.1} parent=47 // pred_check_branch
          %2313 = sbr.rel (%p2311) target = $region52
        $region51: #{feat_transformer.1} parent=47 // pred_region
          %s2314 = smul.u32 13, %s18
          %s2315 = ssub.s32 25, %s2314
          %p2316 = scmp.lt.s32.totalorder %s2315, 13
          %s2317 = scalar_select %p2316, %s2315, 13
          %s2318 = smul.u32 8, %s2317
          %p2319 = scmp.ne.s32.totalorder 0, %s2318
          %s2320 = smul.addr %s2314, 8
          %s2321 = scalar_lea.vmem %s7, %s2320
          // Predicated region
          $region53: #{feat_transformer.1} parent=51 // pred_check
            %p2322 = pneg %p2319
          $region54: #{feat_transformer.1} parent=51 // pred_check_branch
            %2324 = sbr.rel (%p2322) target = $region56
          $region55: #{feat_transformer.1} parent=51 // pred_region
            // Predicated region
            $region57: #{feat_transformer.1} parent=55 // pred_check
              _
            $region58: #{feat_transformer.1} parent=55 // pred_check_branch
              %2326 = sbr.rel (0) target = $region60
            $region59: #{feat_transformer.1} parent=55 // pred_region
              // Predicated region
              $region79: #{feat_transformer.1} parent=59 // pred_check
                _
              $region80: #{feat_transformer.1} parent=59 // pred_check_branch
                %2401 = sbr.rel (0) target = $region82
              $region81: #{feat_transformer.1} parent=59 // pred_region
                %s2402 = sdiv.u32.pop %s2317, 13
                %s2403 = srem.u32.pop %s2317, 13
                // While loop
                $region83: #{feat_transformer.1} parent=81 // loop_pre_header
                  _
                $region84: #{feat_transformer.1} parent=81 // loop_header
                  %s2405 = sphi 0, %s2407
                  %p2406 = scmp.ge.s32.totalorder %s2405, %s2402
                  %s2410 = sphi 0, %s2441
                  %s2411 = sphi %s2310, %s2444
                  %s2412 = sphi %s2321, %s2445
                $region85: #{feat_transformer.1} parent=81 // loop_header_branch
                  %2409 = sbr.rel (%p2406) target = $region89
                $region86: #{feat_transformer.1} parent=81 // loop_body
                  %v2413 = vld [vmem:[%s2411] sm:$0xff]
                  %2414 = vst [vmem:[%s2412] sm:$0xff] %v2413
                  %v2415 = vld [vmem:[%s2411 + $0x8] sm:$0xff]
                  %2416 = vst [vmem:[%s2412 + $0x8] sm:$0xff] %v2415
                  %v2417 = vld [vmem:[%s2411 + $0x10] sm:$0xff]
                  %2418 = vst [vmem:[%s2412 + $0x10] sm:$0xff] %v2417
                  %v2419 = vld [vmem:[%s2411 + $0x18] sm:$0xff]
                  %2420 = vst [vmem:[%s2412 + $0x18] sm:$0xff] %v2419
                  %v2421 = vld [vmem:[%s2411 + $0x20] sm:$0xff]
                  %2422 = vst [vmem:[%s2412 + $0x20] sm:$0xff] %v2421
                  %v2423 = vld [vmem:[%s2411 + $0x28] sm:$0xff]
                  %2424 = vst [vmem:[%s2412 + $0x28] sm:$0xff] %v2423
                  %v2425 = vld [vmem:[%s2411 + $0x30] sm:$0xff]
                  %2426 = vst [vmem:[%s2412 + $0x30] sm:$0xff] %v2425
                  %v2427 = vld [vmem:[%s2411 + $0x38] sm:$0xff]
                  %2428 = vst [vmem:[%s2412 + $0x38] sm:$0xff] %v2427
                  %v2429 = vld [vmem:[%s2411 + $0x40] sm:$0xff]
                  %2430 = vst [vmem:[%s2412 + $0x40] sm:$0xff] %v2429
                  %v2431 = vld [vmem:[%s2411 + $0x48] sm:$0xff]
                  %2432 = vst [vmem:[%s2412 + $0x48] sm:$0xff] %v2431
                  %v2433 = vld [vmem:[%s2411 + $0x50] sm:$0xff]
                  %2434 = vst [vmem:[%s2412 + $0x50] sm:$0xff] %v2433
                  %v2435 = vld [vmem:[%s2411 + $0x58] sm:$0xff]
                  %2436 = vst [vmem:[%s2412 + $0x58] sm:$0xff] %v2435
                  %v2437 = vld [vmem:[%s2411 + $0x60] sm:$0xff]
                  %2438 = vst [vmem:[%s2412 + $0x60] sm:$0xff] %v2437
                  %s2439 = sadd.s32 1, %s2410
                  %p2440 = scmp.ge.s32.totalorder %s2439, %s2402
                  %s2441 = scalar_select %p2440, 0, %s2439
                  %s2442 = smul.u32 %s2441, 104
                  %s2443 = smul.u32 %s2441, 104
                  %s2444 = scalar_lea.vmem %s2310, %s2442 [#allocation2]
                  %s2445 = scalar_lea.vmem %s2321, %s2443
                $region87: #{feat_transformer.1} parent=81 // loop_footer
                  %s2407 = sadd.s32 %s2405, 1
                $region88: #{feat_transformer.1} parent=81 // loop_footer_branch
                  %2404 = sbr.rel target = $region84
                $region89: #{feat_transformer.1} parent=81 // loop_exit
                  _
                %s2446 = sdiv.u32.pop %s2317, 13
                %s2447 = srem.u32.pop %s2317, 13
                %s2448 = smul.u32 %s2446, 13
                %s2449 = smul.u32 8, %s2448
                %s2450 = scalar_lea.vmem %s2310, %s2449 [#allocation2]
                %s2451 = smul.u32 8, %s2448
                %s2452 = scalar_lea.vmem %s2321, %s2451
                // While loop
                $region90: #{feat_transformer.1} parent=81 // loop_pre_header
                  _
                $region91: #{feat_transformer.1} parent=81 // loop_header
                  %s2454 = sphi 0, %s2456
                  %p2455 = scmp.ge.s32.totalorder %s2454, %s2447
                  %s2459 = sphi 0, %s2466
                  %s2460 = sphi %s2450, %s2469
                  %s2461 = sphi %s2452, %s2470
                $region92: #{feat_transformer.1} parent=81 // loop_header_branch
                  %2458 = sbr.rel (%p2455) target = $region96
                $region93: #{feat_transformer.1} parent=81 // loop_body
                  %v2462 = vld [vmem:[%s2460] sm:$0xff]
                  %2463 = vst [vmem:[%s2461] sm:$0xff] %v2462
                  %s2464 = sadd.s32 1, %s2459
                  %p2465 = scmp.ge.s32.totalorder %s2464, %s2447
                  %s2466 = scalar_select %p2465, 0, %s2464
                  %s2467 = smul.u32 %s2466, 8
                  %s2468 = smul.u32 %s2466, 8
                  %s2469 = scalar_lea.vmem %s2450, %s2467 [#allocation2]
                  %s2470 = scalar_lea.vmem %s2452, %s2468
                $region94: #{feat_transformer.1} parent=81 // loop_footer
                  %s2456 = sadd.s32 %s2454, 1
                $region95: #{feat_transformer.1} parent=81 // loop_footer_branch
                  %2453 = sbr.rel target = $region91
                $region96: #{feat_transformer.1} parent=81 // loop_exit
                  _
              $region82: #{feat_transformer.1} parent=59 // pred_fallthru
                _
              // Predicated region
              $region97: #{feat_transformer.1} parent=59 // pred_check
                _
              $region98: #{feat_transformer.1} parent=59 // pred_check_branch
                %2472 = sbr.rel target = $region100
              $region99: #{feat_transformer.1} parent=59 // pred_region
                _
              $region100: #{feat_transformer.1} parent=59 // pred_fallthru
                _
            $region60: #{feat_transformer.1} parent=55 // pred_fallthru
              _
            // Predicated region
            $region61: #{feat_transformer.1} parent=55 // pred_check
              _
            $region62: #{feat_transformer.1} parent=55 // pred_check_branch
              %2328 = sbr.rel target = $region64
            $region63: #{feat_transformer.1} parent=55 // pred_region
              %s2330 = ssub.s32 256, 1
              %s2331 = sdiv.u32.pop %s2317, 13
              %s2332 = srem.u32.pop %s2317, 13
              // While loop
              $region65: #{feat_transformer.1} parent=63 // loop_pre_header
                _
              $region66: #{feat_transformer.1} parent=63 // loop_header
                %s2334 = sphi 0, %s2336
                %p2335 = scmp.ge.s32.totalorder %s2334, %s2331
                %s2339 = sphi 0, %s2370
                %s2340 = sphi %s2310, %s2373
                %s2341 = sphi %s2321, %s2374
              $region67: #{feat_transformer.1} parent=63 // loop_header_branch
                %2338 = sbr.rel (%p2335) target = $region71
              $region68: #{feat_transformer.1} parent=63 // loop_body
                %v2342 = vld [vmem:[%s2340] sm:%s2330]
                %2343 = vst [vmem:[%s2341] sm:%s2330] %v2342
                %v2344 = vld [vmem:[%s2340 + $0x8] sm:%s2330]
                %2345 = vst [vmem:[%s2341 + $0x8] sm:%s2330] %v2344
                %v2346 = vld [vmem:[%s2340 + $0x10] sm:%s2330]
                %2347 = vst [vmem:[%s2341 + $0x10] sm:%s2330] %v2346
                %v2348 = vld [vmem:[%s2340 + $0x18] sm:%s2330]
                %2349 = vst [vmem:[%s2341 + $0x18] sm:%s2330] %v2348
                %v2350 = vld [vmem:[%s2340 + $0x20] sm:%s2330]
                %2351 = vst [vmem:[%s2341 + $0x20] sm:%s2330] %v2350
                %v2352 = vld [vmem:[%s2340 + $0x28] sm:%s2330]
                %2353 = vst [vmem:[%s2341 + $0x28] sm:%s2330] %v2352
                %v2354 = vld [vmem:[%s2340 + $0x30] sm:%s2330]
                %2355 = vst [vmem:[%s2341 + $0x30] sm:%s2330] %v2354
                %v2356 = vld [vmem:[%s2340 + $0x38] sm:%s2330]
                %2357 = vst [vmem:[%s2341 + $0x38] sm:%s2330] %v2356
                %v2358 = vld [vmem:[%s2340 + $0x40] sm:%s2330]
                %2359 = vst [vmem:[%s2341 + $0x40] sm:%s2330] %v2358
                %v2360 = vld [vmem:[%s2340 + $0x48] sm:%s2330]
                %2361 = vst [vmem:[%s2341 + $0x48] sm:%s2330] %v2360
                %v2362 = vld [vmem:[%s2340 + $0x50] sm:%s2330]
                %2363 = vst [vmem:[%s2341 + $0x50] sm:%s2330] %v2362
                %v2364 = vld [vmem:[%s2340 + $0x58] sm:%s2330]
                %2365 = vst [vmem:[%s2341 + $0x58] sm:%s2330] %v2364
                %v2366 = vld [vmem:[%s2340 + $0x60] sm:%s2330]
                %2367 = vst [vmem:[%s2341 + $0x60] sm:%s2330] %v2366
                %s2368 = sadd.s32 1, %s2339
                %p2369 = scmp.ge.s32.totalorder %s2368, %s2331
                %s2370 = scalar_select %p2369, 0, %s2368
                %s2371 = smul.u32 %s2370, 104
                %s2372 = smul.u32 %s2370, 104
                %s2373 = scalar_lea.vmem %s2310, %s2371 [#allocation2]
                %s2374 = scalar_lea.vmem %s2321, %s2372
              $region69: #{feat_transformer.1} parent=63 // loop_footer
                %s2336 = sadd.s32 %s2334, 1
              $region70: #{feat_transformer.1} parent=63 // loop_footer_branch
                %2333 = sbr.rel target = $region66
              $region71: #{feat_transformer.1} parent=63 // loop_exit
                _
              %s2375 = sdiv.u32.pop %s2317, 13
              %s2376 = srem.u32.pop %s2317, 13
              %s2377 = smul.u32 %s2375, 13
              %s2378 = smul.u32 8, %s2377
              %s2379 = scalar_lea.vmem %s2310, %s2378 [#allocation2]
              %s2380 = smul.u32 8, %s2377
              %s2381 = scalar_lea.vmem %s2321, %s2380
              // While loop
              $region72: #{feat_transformer.1} parent=63 // loop_pre_header
                _
              $region73: #{feat_transformer.1} parent=63 // loop_header
                %s2383 = sphi 0, %s2385
                %p2384 = scmp.ge.s32.totalorder %s2383, %s2376
                %s2388 = sphi 0, %s2395
                %s2389 = sphi %s2379, %s2398
                %s2390 = sphi %s2381, %s2399
              $region74: #{feat_transformer.1} parent=63 // loop_header_branch
                %2387 = sbr.rel (%p2384) target = $region78
              $region75: #{feat_transformer.1} parent=63 // loop_body
                %v2391 = vld [vmem:[%s2389] sm:%s2330]
                %2392 = vst [vmem:[%s2390] sm:%s2330] %v2391
                %s2393 = sadd.s32 1, %s2388
                %p2394 = scmp.ge.s32.totalorder %s2393, %s2376
                %s2395 = scalar_select %p2394, 0, %s2393
                %s2396 = smul.u32 %s2395, 8
                %s2397 = smul.u32 %s2395, 8
                %s2398 = scalar_lea.vmem %s2379, %s2396 [#allocation2]
                %s2399 = scalar_lea.vmem %s2381, %s2397
              $region76: #{feat_transformer.1} parent=63 // loop_footer
                %s2385 = sadd.s32 %s2383, 1
              $region77: #{feat_transformer.1} parent=63 // loop_footer_branch
                %2382 = sbr.rel target = $region73
              $region78: #{feat_transformer.1} parent=63 // loop_exit
                _
            $region64: #{feat_transformer.1} parent=55 // pred_fallthru
              _
          $region56: #{feat_transformer.1} parent=51 // pred_fallthru
            _
          %2473 = vnop
        $region52: #{feat_transformer.1} parent=47 // pred_fallthru
          _
      $region48: #{feat_transformer.1} parent=5 // pred_fallthru
        _
      %p2474 = scmp.le.s32.totalorder 2, %s13
      // Predicated region
      $region101: #{feat_transformer.1} parent=5 // pred_check
        %p2475 = pneg %p2474
      $region102: #{feat_transformer.1} parent=5 // pred_check_branch
        %2477 = sbr.rel (%p2475) target = $region104
      $region103: #{feat_transformer.1} parent=5 // pred_region
        %s2478 = ssub.s32 %s13, 2
        // Predicated region
        $region105: #{feat_transformer.1} parent=103 // pred_check
          %p2479 = pneg %p194
        $region106: #{feat_transformer.1} parent=103 // pred_check_branch
          %2481 = sbr.rel (%p2479) target = $region108
        $region107: #{feat_transformer.1} parent=103 // pred_region
          %s2482 = sand.u32 %s179, 1
          %s2483 = sand.u32 %s179, 1
          %s2484 = smul.addr %s2483, 104
          %s2485 = scalar_lea.vmem [#allocation2], %s2484
        $region108: #{feat_transformer.1} parent=103 // pred_fallthru
          _
      $region104: #{feat_transformer.1} parent=5 // pred_fallthru
        _
    $region6: #{feat_transformer.1} parent=1 // loop_footer
      %s17 = sadd.s32 1, %s13
    $region7: #{feat_transformer.1} parent=1 // loop_footer_branch
      %12 = sbr.rel target = $region3
    $region8: #{feat_transformer.1} parent=1 // loop_exit
      _

</llo_original>
